<compile_context>
chip_gen: v5e
topology: v5e:2x2
jax: 0.10.0
libtpu: 0.0.40
codegen_flags: <defaults>
</compile_context>

<pallas_src>
import functools

import jax
import jax.numpy as jnp
import numpy as np
from jax.experimental import pallas as pl
from jax.experimental.pallas import tpu as pltpu

F_IN = 14                                  # polyline point features
N_LAYERS = 4
D_HALF = F_IN * (2 ** (N_LAYERS - 1))      # 112  (PGN last-layer width)
D_HALF_PAD = 128                           # lane-padded half width
D_GLOBAL = 2 * D_HALF                      # 224  (PGN out_features, module view)
D_GLOBAL_PAD = 2 * D_HALF_PAD              # 256  (on-chip / inter-kernel layout)
N_HEADS = 14
HEAD_DIM = D_GLOBAL // N_HEADS             # 16
D_OUT = 128

USE_BF16_MATMUL = False                    # see TODO above

_CORE_PARALLEL = getattr(pltpu, "CORE_PARALLEL", None)


def _relu(x):
    return jnp.maximum(x, 0.0)


def _mm(a, b):
    """Matmul with f32 accumulation; optional bf16 input cast (halves HBM/VMEM bytes)."""
    if USE_BF16_MATMUL:
        a = a.astype(jnp.bfloat16)
        b = b.astype(jnp.bfloat16)
    return jnp.dot(a, b, preferred_element_type=jnp.float32)


def _round_up(x, m):
    return ((x + m - 1) // m) * m


# ----------------------------- chip-specific config -----------------------------

def _chip_config():
    # Conservative (v7x-like) defaults if the hardware query fails.
    vmem_cap = 64 * 1024 * 1024
    try:
        info = pltpu.get_tpu_info()
        vmem_cap = int(getattr(info, "vmem_capacity_bytes", vmem_cap))
    except Exception:
        pass
    big_vmem = vmem_cap >= 100 * 1024 * 1024      # v5e / v6e: 128 MiB physical VMEM
    return {
        "vmem_limit": (64 if big_vmem else 32) * 1024 * 1024,
        "row_block": 512 if big_vmem else 256,    # PGN rows per block
        "batch_block": 256 if big_vmem else 128,  # attention batch rows per block
        "p_chunk": 16,                            # attention polyline chunk (flash axis)
        "multi_core": not big_vmem,               # v7x: 2 TensorCores per chip
    }


def _dim_sems(n_parallel_blocks, cfg, n_reduce_axes=0):
    # v7x: split the independent row/batch axis across the 2 TensorCores when the grid
    # actually has >= 2 blocks; otherwise plain "parallel" (safe, measured ~no-op).
    if cfg["multi_core"] and _CORE_PARALLEL is not None and n_parallel_blocks >= 2:
        return (_CORE_PARALLEL,) + (pltpu.ARBITRARY,) * n_reduce_axes
    return ("parallel",) + ("arbitrary",) * n_reduce_axes


def _const_spec(arr, grid_rank):
    """Grid-constant (weight / bias) input: one full-array block for every grid point."""
    zeros = (0,) * arr.ndim
    imap = (lambda i: zeros) if grid_rank == 1 else (lambda i, j: zeros)
    return pl.BlockSpec(arr.shape, imap)


# ----------------------------- Pallas kernels -----------------------------

def pgn_kernel(x_ref, w0, b0, wt1, wb1, b1, wt2, wb2, b2, wt3, wb3, b3, out_ref):
    """Polyline subgraph net, cluster-major.

    x_ref: (C, NB, F); out_ref: (NB, 256).
    Layer i>=1 weights are pre-split so that
        relu(concat(h, broadcast(maxpool(h))) @ W + b)
      == relu(h @ W_top + maxpool(h) @ W_bot + b)
    (no lane concat, no C x agg-half FLOPs).  The last layer is lane-padded to 128
    output columns (zeros), so `agg` carries exact zeros in lanes 112..127 and the
    final concat+maxpool reduces to two lane-dense 128-wide stores of `agg`.
    """
    x = x_ref[...]
    c, nb, f = x.shape
    h = _relu(_mm(x.reshape(c * nb, f), w0[...]).reshape(c, nb, -1) + b0[...])
    agg = jnp.max(h, axis=0)                      # (NB, d): VPU max over C slabs
    for wt, wb, bias in ((wt1, wb1, b1), (wt2, wb2, b2), (wt3, wb3, b3)):
        dp = h.shape[-1]
        h_proj = _mm(h.reshape(c * nb, dp), wt[...]).reshape(c, nb, -1)
        a_proj = _mm(agg, wb[...])                # (NB, d_new)
        h = _relu(h_proj + a_proj[None, :, :] + bias[...])
        agg = jnp.max(h, axis=0)
    # max over C of concat(h, broadcast(max(h))) == [agg, agg]  (exact shortcut)
    out_ref[:, 0:D_HALF_PAD] = agg
    out_ref[:, D_HALF_PAD:D_GLOBAL_PAD] = agg


def global_kernel(x_ref, wq, bq, wk, bk, wv, bv, wo, bo, wl, bl, hsum, hexp,
                  out_ref, q0_sc, m_sc, l_sc, acc_sc, *, p_total):
    """14-head self-attention for query position 0 -> Linear(224,128) + ReLU.

    x_ref: (PP, BB, 256) polyline-chunk of the (padded-layout) encodings.  Flash-style
    online softmax over the polyline grid axis; hsum (256,14) / hexp (14,256) are the
    block-diagonal head-sum / head-expand matrices; the 1/sqrt(head_dim) scale is
    pre-folded into wq/bq.  out_ref: (BB, 128), written on the last chunk only.
    """
    j = pl.program_id(1)
    x = x_ref[...]
    pp, bb, d = x.shape

    @pl.when(j == 0)
    def _init():
        q0_sc[...] = _relu(_mm(x[0], wq[...]) + bq[...])   # polyline 0 = the query row
        m_sc[...] = jnp.full(m_sc.shape, -jnp.inf, m_sc.dtype)
        l_sc[...] = jnp.zeros(l_sc.shape, l_sc.dtype)
        acc_sc[...] = jnp.zeros(acc_sc.shape, acc_sc.dtype)

    flat = x.reshape(pp * bb, d)
    k = _relu(_mm(flat, wk[...]) + bk[...]).reshape(pp, bb, d)
    v = _relu(_mm(flat, wv[...]) + bv[...]).reshape(pp, bb, d)

    # Per-head scores via one block-diagonal segment-sum matmul (no 16-lane head loop).
    prod = q0_sc[...][None, :, :] * k                                   # (PP, BB, 256)
    s = _mm(prod.reshape(pp * bb, d), hsum[...]).reshape(pp, bb, N_HEADS)

    # Mask polylines past the true P (zero-padded tail of the P axis).
    p_idx = j * pp + jax.lax.broadcasted_iota(jnp.int32, (pp, 1, 1), 0)
    s = jnp.where(p_idx < p_total, s, -jnp.inf)

    # Online softmax over the polyline axis.
    m_new = jnp.maximum(m_sc[...], jnp.max(s, axis=0))                  # (BB, H)
    alpha = jnp.exp(m_sc[...] - m_new)
    e = jnp.exp(s - m_new[None, :, :])                                  # (PP, BB, H)
    l_sc[...] = alpha * l_sc[...] + jnp.sum(e, axis=0)
    e_exp = _mm(e.reshape(pp * bb, N_HEADS), hexp[...]).reshape(pp, bb, d)
    acc_sc[...] = _mm(alpha, hexp[...]) * acc_sc[...] + jnp.sum(e_exp * v, axis=0)
    m_sc[...] = m_new

    @pl.when(j == pl.num_programs(1) - 1)
    def _finalize():
        # Pad lanes have l == 0 and acc == 0; clamp so acc * 1/l stays exactly 0 there
        # (real lanes have l >= 1, so the clamp is a no-op for them).
        l_exp = jnp.maximum(_mm(l_sc[...], hexp[...]), 0.5)             # (BB, 256)
        ctx = acc_sc[...] * pl.reciprocal(l_exp, approx=True)
        y = _relu(_mm(ctx, wo[...]) + bo[...])
        out_ref[...] = _relu(_mm(y, wl[...]) + bl[...])


# ----------------------------- wrappers -----------------------------

def pgn_forward(x_cnf, params, cfg):
    c, n, f = x_cnf.shape
    nb = min(cfg["row_block"], _round_up(n, 8))
    n_pad = _round_up(n, nb)
    if n_pad != n:
        x_cnf = jnp.pad(x_cnf, ((0, 0), (0, n_pad - n), (0, 0)))
    grid = (n_pad // nb,)
    in_specs = [pl.BlockSpec((c, nb, f), lambda i: (0, i, 0))]
    in_specs += [_const_spec(w, 1) for w in params]
    out = pl.pallas_call(
        pgn_kernel,
        out_shape=jax.ShapeDtypeStruct((n_pad, D_GLOBAL_PAD), jnp.float32),
        grid=grid,
        in_specs=in_specs,
        out_specs=pl.BlockSpec((nb, D_GLOBAL_PAD), lambda i: (i, 0)),
        compiler_params=pltpu.CompilerParams(
            dimension_semantics=_dim_sems(grid[0], cfg),
            vmem_limit_bytes=cfg["vmem_limit"]),
    )(x_cnf, *params)
    return out[:n] if n_pad != n else out


def global_forward(enc_pbd, params, cfg):
    p, b, d = enc_pbd.shape
    bb = min(cfg["batch_block"], _round_up(b, 8))
    b_pad = _round_up(b, bb)
    pp = min(p, cfg["p_chunk"])
    p_pad = _round_up(p, pp)
    if b_pad != b or p_pad != p:
        enc_pbd = jnp.pad(enc_pbd, ((0, p_pad - p), (0, b_pad - b), (0, 0)))
    grid = (b_pad // bb, p_pad // pp)                 # (batch blocks, polyline chunks)
    in_specs = [pl.BlockSpec((pp, bb, d), lambda i, j: (j, i, 0))]
    in_specs += [_const_spec(w, 2) for w in params]
    out = pl.pallas_call(
        functools.partial(global_kernel, p_total=p),
        out_shape=jax.ShapeDtypeStruct((b_pad, D_OUT), jnp.float32),
        grid=grid,
        in_specs=in_specs,
        out_specs=pl.BlockSpec((bb, D_OUT), lambda i, j: (i, 0)),
        scratch_shapes=[pltpu.VMEM((bb, D_GLOBAL_PAD), jnp.float32),   # q0
                        pltpu.VMEM((bb, N_HEADS), jnp.float32),        # running max m
                        pltpu.VMEM((bb, N_HEADS), jnp.float32),        # running denom l
                        pltpu.VMEM((bb, D_GLOBAL_PAD), jnp.float32)],  # acc
        compiler_params=pltpu.CompilerParams(
            dimension_semantics=_dim_sems(grid[0], cfg, n_reduce_axes=1),
            vmem_limit_bytes=cfg["vmem_limit"]),
    )(enc_pbd, *params)
    return out[:b] if b_pad != b else out


# ----------------------------- parameter prep -----------------------------

def prep_pgn_params(pgn_params):
    """[W0,b0,...,W3,b3] -> [W0,b0, Wt1,Wb1,b1, Wt2,Wb2,b2, Wt3,Wb3,b3] with the last
    layer's output lane-padded 112 -> 128 (zero columns; exact since ReLU(0)=0)."""
    out = [pgn_params[0], pgn_params[1]]
    for i in range(1, N_LAYERS):
        w, bias = pgn_params[2 * i], pgn_params[2 * i + 1]
        half = w.shape[0] // 2
        wt, wb = w[:half], w[half:]
        if i == N_LAYERS - 1:
            pad = D_HALF_PAD - wt.shape[1]
            wt = jnp.pad(wt, ((0, 0), (0, pad)))
            wb = jnp.pad(wb, ((0, 0), (0, pad)))
            bias = jnp.pad(bias, ((0, 0), (0, pad)))
        out += [wt, wb, bias]
    return out


def _pad224(x, axis):
    """Re-lay a 224-wide axis as [112 real | 16 zero | 112 real | 16 zero] (256 lanes)."""
    lo, hi = jnp.split(x, 2, axis=axis)
    pad = [(0, 0)] * x.ndim
    pad[axis] = (0, D_HALF_PAD - D_HALF)
    return jnp.concatenate([jnp.pad(lo, pad), jnp.pad(hi, pad)], axis=axis)


def _head_matrices_padded():
    """Block-diagonal head-sum (256,14) and head-expand (14,256) matrices in the padded
    lane layout (heads 0..6 -> lanes 0..111, heads 7..13 -> lanes 128..239)."""
    hsum = np.zeros((D_GLOBAL_PAD, N_HEADS), np.float32)
    for h in range(N_HEADS):
        base = h * HEAD_DIM if h < N_HEADS // 2 else D_HALF_PAD + (h - N_HEADS // 2) * HEAD_DIM
        hsum[base:base + HEAD_DIM, h] = 1.0
    return jnp.asarray(hsum), jnp.asarray(hsum.T)


def prep_global_params(global_params):
    wq, bq, wk, bk, wv, bv, wo, bo, wl, bl = global_params
    # ReLU commutes with a positive scale -> folding 1/sqrt(head_dim) into wq/bq is exact.
    scale = jnp.float32(1.0 / np.sqrt(HEAD_DIM))
    wq, bq = wq * scale, bq * scale
    pad_mat = lambda w: _pad224(_pad224(w, 0), 1)
    pad_vec = lambda v: _pad224(v, 1)
    hsum, hexp = _head_matrices_padded()
    return [pad_mat(wq), pad_vec(bq), pad_mat(wk), pad_vec(bk), pad_mat(wv), pad_vec(bv),
            pad_mat(wo), pad_vec(bo), _pad224(wl, 0), bl, hsum, hexp]


def vectornet_forward(polylines, pgn_params, global_params):
    cfg = _chip_config()
    stacked = jnp.stack(polylines, axis=0)                           # (P, B, C, F)
    p, b, c, f = stacked.shape
    # Cluster-major layout for the PGN: the per-layer max-pool becomes a reduction over
    # the leading (non-vreg) axis and the agg broadcast is free vreg reuse.
    x_cnf = jnp.transpose(stacked.reshape(p * b, c, f), (1, 0, 2))   # (C, P*B, F)
    enc = pgn_forward(x_cnf, prep_pgn_params(pgn_params), cfg)       # (P*B, 256)
    enc_pbd = enc.reshape(p, b, D_GLOBAL_PAD)                        # free reshape
    return global_forward(enc_pbd, prep_global_params(global_params), cfg)   # (B, 128)


# ----------------------------- pure-JAX reference -----------------------------

def reference_forward(polylines, pgn_params, global_params):
    stacked = jnp.stack(polylines, axis=0)
    p, b, c, f = stacked.shape
    x = stacked.reshape(p * b, c, f)
    ws = pgn_params
    for i in range(N_LAYERS):
        w, bb = ws[2 * i], ws[2 * i + 1]
        d = x.shape[-1]
        h = _relu(jnp.dot(x.reshape(-1, d), w,
                          preferred_element_type=jnp.float32) + bb).reshape(p * b, c, d)
        agg = jnp.max(h, axis=1, keepdims=True)
        x = jnp.concatenate([h, jnp.broadcast_to(agg, h.shape)], axis=-1)
    enc = jnp.max(x, axis=1).reshape(p, b, D_GLOBAL).transpose(1, 0, 2)   # (B, P, 224)

    wq, bq, wk, bk, wv, bv, wo, bo, wl, bl = global_params
    bsz, pp, d = enc.shape
    x2 = enc.reshape(bsz * pp, d)
    q = _relu(x2 @ wq + bq).reshape(bsz, pp, d)
    k = _relu(x2 @ wk + bk).reshape(bsz, pp, d)
    v = _relu(x2 @ wv + bv).reshape(bsz, pp, d)
    scale = 1.0 / jnp.sqrt(jnp.float32(HEAD_DIM))
    heads = []
    for h in range(N_HEADS):
        lo = h * HEAD_DIM
        s = jnp.einsum('bqd,bkd->bqk', q[:, :, lo:lo + HEAD_DIM],
                       k[:, :, lo:lo + HEAD_DIM]) * scale
        a = jax.nn.softmax(s, axis=-1)
        heads.append(jnp.einsum('bqk,bkd->bqd', a, v[:, :, lo:lo + HEAD_DIM]))
    y = jnp.concatenate(heads, axis=-1).reshape(bsz * pp, d)
    y = _relu(y @ wo + bo).reshape(bsz, pp, d)
    out = _relu(y @ wl + bl)
    return out[:, 0, :]


# ----------------------------- deterministic params -----------------------------

def init_params(key):
    def dense(k, d_in, d_out):
        kw, kb = jax.random.split(k)
        w = jax.random.normal(kw, (d_in, d_out), jnp.float32) / np.sqrt(d_in)
        bias = jax.random.normal(kb, (1, d_out), jnp.float32) * 0.01
        return w, bias

    keys = jax.random.split(key, N_LAYERS + 5)
    pgn_params = []
    d = F_IN
    for i in range(N_LAYERS):
        w, bias = dense(keys[i], d, d)
        pgn_params += [w, bias]
        d *= 2                                   # concat with max-pooled agg doubles dim

    wq, bq = dense(keys[N_LAYERS + 0], D_GLOBAL, D_GLOBAL)
    wk, bk = dense(keys[N_LAYERS + 1], D_GLOBAL, D_GLOBAL)
    wv, bv = dense(keys[N_LAYERS + 2], D_GLOBAL, D_GLOBAL)
    wo, bo = dense(keys[N_LAYERS + 3], D_GLOBAL, D_GLOBAL)
    wl, bl = dense(keys[N_LAYERS + 4], D_GLOBAL, D_OUT)
    global_params = [wq, bq, wk, bk, wv, bv, wo, bo, wl, bl]
    return pgn_params, global_params


# ----------------------------- main -----------------------------

if __name__ == "__main__":
    B, P, C = 2, 8, 16                           # batch, num polylines, cluster_size
    key = jax.random.PRNGKey(0)
    k_par, k_data = jax.random.split(key)
    pgn_params, global_params = init_params(k_par)

    data_keys = jax.random.split(k_data, P)
    polylines = [jax.random.normal(data_keys[i], (B, C, F_IN), jnp.float32)
                 for i in range(P)]

    out = vectornet_forward(polylines, pgn_params, global_params)
    out = jax.block_until_ready(out)

    assert out.shape == (B, D_OUT), out.shape
    assert bool(jnp.isfinite(out).all())

    ref = reference_forward(polylines, pgn_params, global_params)
    np.testing.assert_allclose(np.asarray(out), np.asarray(ref), rtol=5e-3, atol=5e-3)

    print("KERNEL_OK")
</pallas_src>

<mosaic_0001>
module attributes {stable_mosaic.version = 11 : i64} {
  func.func @pgn_kernel(%arg0: i32, %arg1: memref<16x16x14xf32, #tpu.memory_space<vmem>>, %arg2: memref<14x14xf32, #tpu.memory_space<vmem>>, %arg3: memref<1x14xf32, #tpu.memory_space<vmem>>, %arg4: memref<14x28xf32, #tpu.memory_space<vmem>>, %arg5: memref<14x28xf32, #tpu.memory_space<vmem>>, %arg6: memref<1x28xf32, #tpu.memory_space<vmem>>, %arg7: memref<28x56xf32, #tpu.memory_space<vmem>>, %arg8: memref<28x56xf32, #tpu.memory_space<vmem>>, %arg9: memref<1x56xf32, #tpu.memory_space<vmem>>, %arg10: memref<56x128xf32, #tpu.memory_space<vmem>>, %arg11: memref<56x128xf32, #tpu.memory_space<vmem>>, %arg12: memref<1x128xf32, #tpu.memory_space<vmem>>, %arg13: memref<16x256xf32, #tpu.memory_space<vmem>>) attributes {dimension_semantics = [#tpu.dimension_semantics<parallel>], iteration_bounds = array<i64: 1>, scalar_prefetch = 0 : i64, scratch_operands = 0 : i64, tpu.core_type = #tpu.core_type<tc>, window_params = [{transform_indices = @transform_0, window_bounds = array<i64: 16, 16, 14>}, {pipeline_mode = #tpu.pipeline_mode<synchronous>, transform_indices = @transform_1, window_bounds = array<i64: 14, 14>}, {pipeline_mode = #tpu.pipeline_mode<synchronous>, transform_indices = @transform_2, window_bounds = array<i64: 1, 14>}, {pipeline_mode = #tpu.pipeline_mode<synchronous>, transform_indices = @transform_3, window_bounds = array<i64: 14, 28>}, {pipeline_mode = #tpu.pipeline_mode<synchronous>, transform_indices = @transform_4, window_bounds = array<i64: 14, 28>}, {pipeline_mode = #tpu.pipeline_mode<synchronous>, transform_indices = @transform_5, window_bounds = array<i64: 1, 28>}, {pipeline_mode = #tpu.pipeline_mode<synchronous>, transform_indices = @transform_6, window_bounds = array<i64: 28, 56>}, {pipeline_mode = #tpu.pipeline_mode<synchronous>, transform_indices = @transform_7, window_bounds = array<i64: 28, 56>}, {pipeline_mode = #tpu.pipeline_mode<synchronous>, transform_indices = @transform_8, window_bounds = array<i64: 1, 56>}, {pipeline_mode = #tpu.pipeline_mode<synchronous>, transform_indices = @transform_9, window_bounds = array<i64: 56, 128>}, {pipeline_mode = #tpu.pipeline_mode<synchronous>, transform_indices = @transform_10, window_bounds = array<i64: 56, 128>}, {pipeline_mode = #tpu.pipeline_mode<synchronous>, transform_indices = @transform_11, window_bounds = array<i64: 1, 128>}, {transform_indices = @transform_12, window_bounds = array<i64: 16, 256>}]} {
    %c0 = arith.constant 0 : index
    %c0_0 = arith.constant 0 : index
    %c0_1 = arith.constant 0 : index
    %0 = vector.load %arg1[%c0, %c0_0, %c0_1] : memref<16x16x14xf32, #tpu.memory_space<vmem>>, vector<16x16x14xf32>
    %1 = vector.shape_cast %0 : vector<16x16x14xf32> to vector<256x14xf32>
    %c0_2 = arith.constant 0 : index
    %c0_3 = arith.constant 0 : index
    %2 = vector.load %arg2[%c0_2, %c0_3] : memref<14x14xf32, #tpu.memory_space<vmem>>, vector<14x14xf32>
    %cst = arith.constant dense<0.000000e+00> : vector<256x14xf32>
    %3 = tpu.matmul %1, %2, %cst {dimension_numbers = #tpu.dot_dimension_numbers<[1], [0], [0], [1], [0, 0, 1, 1], [], []>} : vector<256x14xf32>, vector<14x14xf32>, vector<256x14xf32> -> vector<256x14xf32>
    %4 = vector.shape_cast %3 : vector<256x14xf32> to vector<16x16x14xf32>
    %c0_4 = arith.constant 0 : index
    %c0_5 = arith.constant 0 : index
    %5 = vector.load %arg3[%c0_4, %c0_5] : memref<1x14xf32, #tpu.memory_space<vmem>>, vector<1x14xf32>
    %6 = vector.shape_cast %5 : vector<1x14xf32> to vector<1x1x14xf32>
    %7 = vector.broadcast %6 : vector<1x1x14xf32> to vector<16x16x14xf32>
    %8 = arith.addf %4, %7 : vector<16x16x14xf32>
    %cst_6 = arith.constant 0.000000e+00 : f32
    %9 = vector.broadcast %cst_6 : f32 to vector<16x16x14xf32>
    %10 = arith.maximumf %8, %9 : vector<16x16x14xf32>
    %cst_7 = arith.constant dense<0xFF800000> : vector<16x14xf32>
    %11 = vector.multi_reduction <maximumf>, %10, %cst_7 [0] : vector<16x16x14xf32> to vector<16x14xf32>
    %12 = vector.shape_cast %10 : vector<16x16x14xf32> to vector<256x14xf32>
    %c0_8 = arith.constant 0 : index
    %c0_9 = arith.constant 0 : index
    %13 = vector.load %arg4[%c0_8, %c0_9] : memref<14x28xf32, #tpu.memory_space<vmem>>, vector<14x28xf32>
    %cst_10 = arith.constant dense<0.000000e+00> : vector<256x28xf32>
    %14 = tpu.matmul %12, %13, %cst_10 {dimension_numbers = #tpu.dot_dimension_numbers<[1], [0], [0], [1], [0, 0, 1, 1], [], []>} : vector<256x14xf32>, vector<14x28xf32>, vector<256x28xf32> -> vector<256x28xf32>
    %15 = vector.shape_cast %14 : vector<256x28xf32> to vector<16x16x28xf32>
    %c0_11 = arith.constant 0 : index
    %c0_12 = arith.constant 0 : index
    %16 = vector.load %arg5[%c0_11, %c0_12] : memref<14x28xf32, #tpu.memory_space<vmem>>, vector<14x28xf32>
    %cst_13 = arith.constant dense<0.000000e+00> : vector<16x28xf32>
    %17 = tpu.matmul %11, %16, %cst_13 {dimension_numbers = #tpu.dot_dimension_numbers<[1], [0], [0], [1], [0, 0, 1, 1], [], []>} : vector<16x14xf32>, vector<14x28xf32>, vector<16x28xf32> -> vector<16x28xf32>
    %18 = vector.shape_cast %17 : vector<16x28xf32> to vector<1x16x28xf32>
    %19 = vector.broadcast %18 : vector<1x16x28xf32> to vector<16x16x28xf32>
    %20 = arith.addf %15, %19 : vector<16x16x28xf32>
    %c0_14 = arith.constant 0 : index
    %c0_15 = arith.constant 0 : index
    %21 = vector.load %arg6[%c0_14, %c0_15] : memref<1x28xf32, #tpu.memory_space<vmem>>, vector<1x28xf32>
    %22 = vector.shape_cast %21 : vector<1x28xf32> to vector<1x1x28xf32>
    %23 = vector.broadcast %22 : vector<1x1x28xf32> to vector<16x16x28xf32>
    %24 = arith.addf %20, %23 : vector<16x16x28xf32>
    %cst_16 = arith.constant 0.000000e+00 : f32
    %25 = vector.broadcast %cst_16 : f32 to vector<16x16x28xf32>
    %26 = arith.maximumf %24, %25 : vector<16x16x28xf32>
    %cst_17 = arith.constant dense<0xFF800000> : vector<16x28xf32>
    %27 = vector.multi_reduction <maximumf>, %26, %cst_17 [0] : vector<16x16x28xf32> to vector<16x28xf32>
    %28 = vector.shape_cast %26 : vector<16x16x28xf32> to vector<256x28xf32>
    %c0_18 = arith.constant 0 : index
    %c0_19 = arith.constant 0 : index
    %29 = vector.load %arg7[%c0_18, %c0_19] : memref<28x56xf32, #tpu.memory_space<vmem>>, vector<28x56xf32>
    %cst_20 = arith.constant dense<0.000000e+00> : vector<256x56xf32>
    %30 = tpu.matmul %28, %29, %cst_20 {dimension_numbers = #tpu.dot_dimension_numbers<[1], [0], [0], [1], [0, 0, 1, 1], [], []>} : vector<256x28xf32>, vector<28x56xf32>, vector<256x56xf32> -> vector<256x56xf32>
    %31 = vector.shape_cast %30 : vector<256x56xf32> to vector<16x16x56xf32>
    %c0_21 = arith.constant 0 : index
    %c0_22 = arith.constant 0 : index
    %32 = vector.load %arg8[%c0_21, %c0_22] : memref<28x56xf32, #tpu.memory_space<vmem>>, vector<28x56xf32>
    %cst_23 = arith.constant dense<0.000000e+00> : vector<16x56xf32>
    %33 = tpu.matmul %27, %32, %cst_23 {dimension_numbers = #tpu.dot_dimension_numbers<[1], [0], [0], [1], [0, 0, 1, 1], [], []>} : vector<16x28xf32>, vector<28x56xf32>, vector<16x56xf32> -> vector<16x56xf32>
    %34 = vector.shape_cast %33 : vector<16x56xf32> to vector<1x16x56xf32>
    %35 = vector.broadcast %34 : vector<1x16x56xf32> to vector<16x16x56xf32>
    %36 = arith.addf %31, %35 : vector<16x16x56xf32>
    %c0_24 = arith.constant 0 : index
    %c0_25 = arith.constant 0 : index
    %37 = vector.load %arg9[%c0_24, %c0_25] : memref<1x56xf32, #tpu.memory_space<vmem>>, vector<1x56xf32>
    %38 = vector.shape_cast %37 : vector<1x56xf32> to vector<1x1x56xf32>
    %39 = vector.broadcast %38 : vector<1x1x56xf32> to vector<16x16x56xf32>
    %40 = arith.addf %36, %39 : vector<16x16x56xf32>
    %cst_26 = arith.constant 0.000000e+00 : f32
    %41 = vector.broadcast %cst_26 : f32 to vector<16x16x56xf32>
    %42 = arith.maximumf %40, %41 : vector<16x16x56xf32>
    %cst_27 = arith.constant dense<0xFF800000> : vector<16x56xf32>
    %43 = vector.multi_reduction <maximumf>, %42, %cst_27 [0] : vector<16x16x56xf32> to vector<16x56xf32>
    %44 = vector.shape_cast %42 : vector<16x16x56xf32> to vector<256x56xf32>
    %c0_28 = arith.constant 0 : index
    %c0_29 = arith.constant 0 : index
    %45 = vector.load %arg10[%c0_28, %c0_29] : memref<56x128xf32, #tpu.memory_space<vmem>>, vector<56x128xf32>
    %cst_30 = arith.constant dense<0.000000e+00> : vector<256x128xf32>
    %46 = tpu.matmul %44, %45, %cst_30 {dimension_numbers = #tpu.dot_dimension_numbers<[1], [0], [0], [1], [0, 0, 1, 1], [], []>} : vector<256x56xf32>, vector<56x128xf32>, vector<256x128xf32> -> vector<256x128xf32>
    %47 = vector.shape_cast %46 : vector<256x128xf32> to vector<16x16x128xf32>
    %c0_31 = arith.constant 0 : index
    %c0_32 = arith.constant 0 : index
    %48 = vector.load %arg11[%c0_31, %c0_32] : memref<56x128xf32, #tpu.memory_space<vmem>>, vector<56x128xf32>
    %cst_33 = arith.constant dense<0.000000e+00> : vector<16x128xf32>
    %49 = tpu.matmul %43, %48, %cst_33 {dimension_numbers = #tpu.dot_dimension_numbers<[1], [0], [0], [1], [0, 0, 1, 1], [], []>} : vector<16x56xf32>, vector<56x128xf32>, vector<16x128xf32> -> vector<16x128xf32>
    %50 = vector.shape_cast %49 : vector<16x128xf32> to vector<1x16x128xf32>
    %51 = vector.broadcast %50 : vector<1x16x128xf32> to vector<16x16x128xf32>
    %52 = arith.addf %47, %51 : vector<16x16x128xf32>
    %c0_34 = arith.constant 0 : index
    %c0_35 = arith.constant 0 : index
    %53 = vector.load %arg12[%c0_34, %c0_35] : memref<1x128xf32, #tpu.memory_space<vmem>>, vector<1x128xf32>
    %54 = vector.shape_cast %53 : vector<1x128xf32> to vector<1x1x128xf32>
    %55 = vector.broadcast %54 : vector<1x1x128xf32> to vector<16x16x128xf32>
    %56 = arith.addf %52, %55 : vector<16x16x128xf32>
    %cst_36 = arith.constant 0.000000e+00 : f32
    %57 = vector.broadcast %cst_36 : f32 to vector<16x16x128xf32>
    %58 = arith.maximumf %56, %57 : vector<16x16x128xf32>
    %cst_37 = arith.constant dense<0xFF800000> : vector<16x128xf32>
    %59 = vector.multi_reduction <maximumf>, %58, %cst_37 [0] : vector<16x16x128xf32> to vector<16x128xf32>
    %c0_38 = arith.constant 0 : index
    %c0_39 = arith.constant 0 : index
    %60 = vector.load %arg13[%c0_38, %c0_39] : memref<16x256xf32, #tpu.memory_space<vmem>>, vector<16x128xf32>
    tpu.vector_store %arg13[%c0_38, %c0_39], %59 {strides = array<i32>} : memref<16x256xf32, #tpu.memory_space<vmem>>, vector<16x128xf32>,
    %c0_40 = arith.constant 0 : index
    %c128 = arith.constant 128 : index
    %61 = vector.load %arg13[%c0_40, %c128] : memref<16x256xf32, #tpu.memory_space<vmem>>, vector<16x128xf32>
    tpu.vector_store %arg13[%c0_40, %c128], %59 {strides = array<i32>} : memref<16x256xf32, #tpu.memory_space<vmem>>, vector<16x128xf32>,
    return
  }
  func.func @transform_0(%arg0: i32) -> (i32, i32, i32) {
    %c0_i32 = arith.constant 0 : i32
    %c0_i32_0 = arith.constant 0 : i32
    %c0_i32_1 = arith.constant 0 : i32
    return %c0_i32, %arg0, %c0_i32_0 : i32, i32, i32
  }
  func.func @transform_1(%arg0: i32) -> (i32, i32) {
    %c0_i32 = arith.constant 0 : i32
    %c0_i32_0 = arith.constant 0 : i32
    %c0_i32_1 = arith.constant 0 : i32
    return %c0_i32, %c0_i32_0 : i32, i32
  }
  func.func @transform_2(%arg0: i32) -> (i32, i32) {
    %c0_i32 = arith.constant 0 : i32
    %c0_i32_0 = arith.constant 0 : i32
    %c0_i32_1 = arith.constant 0 : i32
    return %c0_i32, %c0_i32_0 : i32, i32
  }
  func.func @transform_3(%arg0: i32) -> (i32, i32) {
    %c0_i32 = arith.constant 0 : i32
    %c0_i32_0 = arith.constant 0 : i32
    %c0_i32_1 = arith.constant 0 : i32
    return %c0_i32, %c0_i32_0 : i32, i32
  }
  func.func @transform_4(%arg0: i32) -> (i32, i32) {
    %c0_i32 = arith.constant 0 : i32
    %c0_i32_0 = arith.constant 0 : i32
    %c0_i32_1 = arith.constant 0 : i32
    return %c0_i32, %c0_i32_0 : i32, i32
  }
  func.func @transform_5(%arg0: i32) -> (i32, i32) {
    %c0_i32 = arith.constant 0 : i32
    %c0_i32_0 = arith.constant 0 : i32
    %c0_i32_1 = arith.constant 0 : i32
    return %c0_i32, %c0_i32_0 : i32, i32
  }
  func.func @transform_6(%arg0: i32) -> (i32, i32) {
    %c0_i32 = arith.constant 0 : i32
    %c0_i32_0 = arith.constant 0 : i32
    %c0_i32_1 = arith.constant 0 : i32
    return %c0_i32, %c0_i32_0 : i32, i32
  }
  func.func @transform_7(%arg0: i32) -> (i32, i32) {
    %c0_i32 = arith.constant 0 : i32
    %c0_i32_0 = arith.constant 0 : i32
    %c0_i32_1 = arith.constant 0 : i32
    return %c0_i32, %c0_i32_0 : i32, i32
  }
  func.func @transform_8(%arg0: i32) -> (i32, i32) {
    %c0_i32 = arith.constant 0 : i32
    %c0_i32_0 = arith.constant 0 : i32
    %c0_i32_1 = arith.constant 0 : i32
    return %c0_i32, %c0_i32_0 : i32, i32
  }
  func.func @transform_9(%arg0: i32) -> (i32, i32) {
    %c0_i32 = arith.constant 0 : i32
    %c0_i32_0 = arith.constant 0 : i32
    %c0_i32_1 = arith.constant 0 : i32
    return %c0_i32, %c0_i32_0 : i32, i32
  }
  func.func @transform_10(%arg0: i32) -> (i32, i32) {
    %c0_i32 = arith.constant 0 : i32
    %c0_i32_0 = arith.constant 0 : i32
    %c0_i32_1 = arith.constant 0 : i32
    return %c0_i32, %c0_i32_0 : i32, i32
  }
  func.func @transform_11(%arg0: i32) -> (i32, i32) {
    %c0_i32 = arith.constant 0 : i32
    %c0_i32_0 = arith.constant 0 : i32
    %c0_i32_1 = arith.constant 0 : i32
    return %c0_i32, %c0_i32_0 : i32, i32
  }
  func.func @transform_12(%arg0: i32) -> (i32, i32) {
    %c0_i32 = arith.constant 0 : i32
    %c0_i32_0 = arith.constant 0 : i32
    return %arg0, %c0_i32 : i32, i32
  }
}

</mosaic_0001>

<llo_original>
// kernel: tpu_custom_call.1
$region0: #{tpu_custom_call.1}
  #allocation0 [shape = 'u32[]', space=smem, size = 0x4, offset = 0x4, fixed_abs, tag = 'smem constant byte address 0x4 - core index']
  #allocation1 [shape = 'u32[72,128]{1,0:T(1,128)}', space=vmem, size = 0x9000, scoped, tag = 'internal scratch']
  %s0 = inlined_call_operand.vmem [shape: f32[16,16,14], index: 0, kind: input, shape index: {}]
  %s1 = inlined_call_operand.vmem [shape: f32[14,14], index: 1, kind: input, shape index: {}]
  %s2 = inlined_call_operand.vmem [shape: f32[1,14], index: 2, kind: input, shape index: {}]
  %s3 = inlined_call_operand.vmem [shape: f32[14,28], index: 3, kind: input, shape index: {}]
  %s4 = inlined_call_operand.vmem [shape: f32[14,28], index: 4, kind: input, shape index: {}]
  %s5 = inlined_call_operand.vmem [shape: f32[1,28], index: 5, kind: input, shape index: {}]
  %s6 = inlined_call_operand.vmem [shape: f32[28,56], index: 6, kind: input, shape index: {}]
  %s7 = inlined_call_operand.vmem [shape: f32[28,56], index: 7, kind: input, shape index: {}]
  %s8 = inlined_call_operand.vmem [shape: f32[1,56], index: 8, kind: input, shape index: {}]
  %s9 = inlined_call_operand.vmem [shape: f32[56,128], index: 9, kind: input, shape index: {}]
  %s10 = inlined_call_operand.vmem [shape: f32[56,128], index: 10, kind: input, shape index: {}]
  %s11 = inlined_call_operand.vmem [shape: f32[1,128], index: 11, kind: input, shape index: {}]
  %s12 = inlined_call_operand.hbm [shape: f32[16,256], index: 12, kind: output, shape index: {}]
  %s13 = sld [smem:[#allocation0]]
  $region58: #{tpu_custom_call.1} parent=0
    _
  %s15 = ssub.s32 1, %s13
  %s16 = scalar_select 0, %s15, %s13
  $region1: #{tpu_custom_call.1} parent=0
    #allocation2 [shape = 'u8[16384]{0}', space=vmem, size = 0x4000, scoped, tag = 'output window, operand 0, single buffered']
    #allocation3 [shape = 's32[1]{0}', space=sflag, size = 0x4, scoped, tag = 'scoped memory for tpu_custom_call.1']
    %17 = vsyncpa [#allocation3], 0
    // Predicated region
    $region2: #{tpu_custom_call.1} parent=1 // pred_check
      _
    $region3: #{tpu_custom_call.1} parent=1 // pred_check_branch
      %19 = sbr.rel (0) target = $region5
    $region4: #{tpu_custom_call.1} parent=1 // pred_region
      _
    $region5: #{tpu_custom_call.1} parent=1 // pred_fallthru
      _
    // Predicated region
    $region6: #{tpu_custom_call.1} parent=1 // pred_check
      _
    $region7: #{tpu_custom_call.1} parent=1 // pred_check_branch
      %21 = sbr.rel (0) target = $region9
    $region8: #{tpu_custom_call.1} parent=1 // pred_region
      _
    $region9: #{tpu_custom_call.1} parent=1 // pred_fallthru
      _
    // Predicated region
    $region10: #{tpu_custom_call.1} parent=1 // pred_check
      _
    $region11: #{tpu_custom_call.1} parent=1 // pred_check_branch
      %23 = sbr.rel (0) target = $region13
    $region12: #{tpu_custom_call.1} parent=1 // pred_region
      _
    $region13: #{tpu_custom_call.1} parent=1 // pred_fallthru
      _
    // Predicated region
    $region14: #{tpu_custom_call.1} parent=1 // pred_check
      _
    $region15: #{tpu_custom_call.1} parent=1 // pred_check_branch
      %25 = sbr.rel (0) target = $region17
    $region16: #{tpu_custom_call.1} parent=1 // pred_region
      _
    $region17: #{tpu_custom_call.1} parent=1 // pred_fallthru
      _
    // Predicated region
    $region18: #{tpu_custom_call.1} parent=1 // pred_check
      _
    $region19: #{tpu_custom_call.1} parent=1 // pred_check_branch
      %27 = sbr.rel (0) target = $region21
    $region20: #{tpu_custom_call.1} parent=1 // pred_region
      _
    $region21: #{tpu_custom_call.1} parent=1 // pred_fallthru
      _
    // Predicated region
    $region22: #{tpu_custom_call.1} parent=1 // pred_check
      _
    $region23: #{tpu_custom_call.1} parent=1 // pred_check_branch
      %29 = sbr.rel (0) target = $region25
    $region24: #{tpu_custom_call.1} parent=1 // pred_region
      _
    $region25: #{tpu_custom_call.1} parent=1 // pred_fallthru
      _
    // Predicated region
    $region26: #{tpu_custom_call.1} parent=1 // pred_check
      _
    $region27: #{tpu_custom_call.1} parent=1 // pred_check_branch
      %31 = sbr.rel (0) target = $region29
    $region28: #{tpu_custom_call.1} parent=1 // pred_region
      _
    $region29: #{tpu_custom_call.1} parent=1 // pred_fallthru
      _
    // Predicated region
    $region30: #{tpu_custom_call.1} parent=1 // pred_check
      _
    $region31: #{tpu_custom_call.1} parent=1 // pred_check_branch
      %33 = sbr.rel (0) target = $region33
    $region32: #{tpu_custom_call.1} parent=1 // pred_region
      _
    $region33: #{tpu_custom_call.1} parent=1 // pred_fallthru
      _
    // Predicated region
    $region34: #{tpu_custom_call.1} parent=1 // pred_check
      _
    $region35: #{tpu_custom_call.1} parent=1 // pred_check_branch
      %35 = sbr.rel (0) target = $region37
    $region36: #{tpu_custom_call.1} parent=1 // pred_region
      _
    $region37: #{tpu_custom_call.1} parent=1 // pred_fallthru
      _
    // Predicated region
    $region38: #{tpu_custom_call.1} parent=1 // pred_check
      _
    $region39: #{tpu_custom_call.1} parent=1 // pred_check_branch
      %37 = sbr.rel (0) target = $region41
    $region40: #{tpu_custom_call.1} parent=1 // pred_region
      _
    $region41: #{tpu_custom_call.1} parent=1 // pred_fallthru
      _
    // Predicated region
    $region42: #{tpu_custom_call.1} parent=1 // pred_check
      _
    $region43: #{tpu_custom_call.1} parent=1 // pred_check_branch
      %39 = sbr.rel (0) target = $region45
    $region44: #{tpu_custom_call.1} parent=1 // pred_region
      _
    $region45: #{tpu_custom_call.1} parent=1 // pred_fallthru
      _
    // Predicated region
    $region46: #{tpu_custom_call.1} parent=1 // pred_check
      _
    $region47: #{tpu_custom_call.1} parent=1 // pred_check_branch
      %41 = sbr.rel (0) target = $region49
    $region48: #{tpu_custom_call.1} parent=1 // pred_region
      _
    $region49: #{tpu_custom_call.1} parent=1 // pred_fallthru
      _
    %v42 = vld [vmem:[%s0] sm:$0xff]
    %v43 = vld [vmem:[%s0 + $0x8] sm:$0xff]
    %v44 = vld [vmem:[%s0 + $0x10] sm:$0xff]
    %v45 = vld [vmem:[%s0 + $0x18] sm:$0xff]
    %v46 = vld [vmem:[%s0 + $0x20] sm:$0xff]
    %v47 = vld [vmem:[%s0 + $0x28] sm:$0xff]
    %v48 = vld [vmem:[%s0 + $0x30] sm:$0xff]
    %v49 = vld [vmem:[%s0 + $0x38] sm:$0xff]
    %v50 = vld [vmem:[%s0 + $0x40] sm:$0xff]
    %v51 = vld [vmem:[%s0 + $0x48] sm:$0xff]
    %v52 = vld [vmem:[%s0 + $0x50] sm:$0xff]
    %v53 = vld [vmem:[%s0 + $0x58] sm:$0xff]
    %v54 = vld [vmem:[%s0 + $0x60] sm:$0xff]
    %v55 = vld [vmem:[%s0 + $0x68] sm:$0xff]
    %v56 = vld [vmem:[%s0 + $0x70] sm:$0xff]
    %v57 = vld [vmem:[%s0 + $0x78] sm:$0xff]
    %v58 = vld [vmem:[%s0 + $0x80] sm:$0xff]
    %v59 = vld [vmem:[%s0 + $0x88] sm:$0xff]
    %v60 = vld [vmem:[%s0 + $0x90] sm:$0xff]
    %v61 = vld [vmem:[%s0 + $0x98] sm:$0xff]
    %v62 = vld [vmem:[%s0 + $0xa0] sm:$0xff]
    %v63 = vld [vmem:[%s0 + $0xa8] sm:$0xff]
    %v64 = vld [vmem:[%s0 + $0xb0] sm:$0xff]
    %v65 = vld [vmem:[%s0 + $0xb8] sm:$0xff]
    %v66 = vld [vmem:[%s0 + $0xc0] sm:$0xff]
    %v67 = vld [vmem:[%s0 + $0xc8] sm:$0xff]
    %v68 = vld [vmem:[%s0 + $0xd0] sm:$0xff]
    %v69 = vld [vmem:[%s0 + $0xd8] sm:$0xff]
    %v70 = vld [vmem:[%s0 + $0xe0] sm:$0xff]
    %v71 = vld [vmem:[%s0 + $0xe8] sm:$0xff]
    %v72 = vld [vmem:[%s0 + $0xf0] sm:$0xff]
    %v73 = vld [vmem:[%s0 + $0xf8] sm:$0xff]
    %v74 = vld [vmem:[%s1] sm:$0xff]
    %v75 = vld [vmem:[%s1 + $0x8] sm:$0x3f]
    %vm76 = vcmask 113664
    %v78 = vsel %vm76, %v42, 0
    %v81 = vsel %vm76, %v43, 0
    %v84 = vsel %vm76, %v44, 0
    %v87 = vsel %vm76, %v45, 0
    %v90 = vsel %vm76, %v46, 0
    %v93 = vsel %vm76, %v47, 0
    %v96 = vsel %vm76, %v48, 0
    %v99 = vsel %vm76, %v49, 0
    %v102 = vsel %vm76, %v50, 0
    %v105 = vsel %vm76, %v51, 0
    %v108 = vsel %vm76, %v52, 0
    %v111 = vsel %vm76, %v53, 0
    %v114 = vsel %vm76, %v54, 0
    %v117 = vsel %vm76, %v55, 0
    %v120 = vsel %vm76, %v56, 0
    %v123 = vsel %vm76, %v57, 0
    %v126 = vsel %vm76, %v58, 0
    %v129 = vsel %vm76, %v59, 0
    %v132 = vsel %vm76, %v60, 0
    %v135 = vsel %vm76, %v61, 0
    %v138 = vsel %vm76, %v62, 0
    %v141 = vsel %vm76, %v63, 0
    %v144 = vsel %vm76, %v64, 0
    %v147 = vsel %vm76, %v65, 0
    %v150 = vsel %vm76, %v66, 0
    %v153 = vsel %vm76, %v67, 0
    %v156 = vsel %vm76, %v68, 0
    %v159 = vsel %vm76, %v69, 0
    %v162 = vsel %vm76, %v70, 0
    %v165 = vsel %vm76, %v71, 0
    %v168 = vsel %vm76, %v72, 0
    %v171 = vsel %vm76, %v73, 0
    %vm173 = vcmask 1045504
    %v175 = vsel %vm173, %v75, 0
    %177 = vmatpush.msra.mxu0 0.0
    %178 = vmatpush.msra.mxu0 0.0
    %179 = vmatpush.msra.mxu0 0.0
    %180 = vmatpush.msra.mxu0 0.0
    %181 = vmatpush.msra.mxu0 0.0
    %182 = vmatpush.msra.mxu0 0.0
    %183 = vmatpush.msra.mxu0 0.0
    %184 = vmatpush.msra.mxu0 0.0
    %185 = vmatpush.msra.mxu0 0.0
    %186 = vmatpush.msra.mxu0 0.0
    %187 = vmatpush.msra.mxu0 0.0
    %188 = vmatpush.msra.mxu0 0.0
    %189 = vmatpush.msra.mxu0 0.0
    %190 = vmatpush.msra.mxu0 0.0
    %191 = vmatpush.msra.mxu0 %v175
    %192 = vmatpush.msra.mxu0 %v74
    %193 = vmatmul.f32.gmra.mxu0 %v78
    %v194 = vpop.f32.mrf.mxu0
    %v195 = vadd.f32 0.0, %v194
    %196 = vmatmul.f32.gmra.mxu0 %v81
    %v197 = vpop.f32.mrf.mxu0
    %v198 = vadd.f32 0.0, %v197
    %199 = vmatmul.f32.gmra.mxu0 %v84
    %v200 = vpop.f32.mrf.mxu0
    %v201 = vadd.f32 0.0, %v200
    %202 = vmatmul.f32.gmra.mxu0 %v87
    %v203 = vpop.f32.mrf.mxu0
    %v204 = vadd.f32 0.0, %v203
    %205 = vmatmul.f32.gmra.mxu0 %v90
    %v206 = vpop.f32.mrf.mxu0
    %v207 = vadd.f32 0.0, %v206
    %208 = vmatmul.f32.gmra.mxu0 %v93
    %v209 = vpop.f32.mrf.mxu0
    %v210 = vadd.f32 0.0, %v209
    %211 = vmatmul.f32.gmra.mxu0 %v96
    %v212 = vpop.f32.mrf.mxu0
    %v213 = vadd.f32 0.0, %v212
    %214 = vmatmul.f32.gmra.mxu0 %v99
    %v215 = vpop.f32.mrf.mxu0
    %v216 = vadd.f32 0.0, %v215
    %217 = vmatmul.f32.gmra.mxu0 %v102
    %v218 = vpop.f32.mrf.mxu0
    %v219 = vadd.f32 0.0, %v218
    %220 = vmatmul.f32.gmra.mxu0 %v105
    %v221 = vpop.f32.mrf.mxu0
    %v222 = vadd.f32 0.0, %v221
    %223 = vmatmul.f32.gmra.mxu0 %v108
    %v224 = vpop.f32.mrf.mxu0
    %v225 = vadd.f32 0.0, %v224
    %226 = vmatmul.f32.gmra.mxu0 %v111
    %v227 = vpop.f32.mrf.mxu0
    %v228 = vadd.f32 0.0, %v227
    %229 = vmatmul.f32.gmra.mxu0 %v114
    %v230 = vpop.f32.mrf.mxu0
    %v231 = vadd.f32 0.0, %v230
    %232 = vmatmul.f32.gmra.mxu0 %v117
    %v233 = vpop.f32.mrf.mxu0
    %v234 = vadd.f32 0.0, %v233
    %235 = vmatmul.f32.gmra.mxu0 %v120
    %v236 = vpop.f32.mrf.mxu0
    %v237 = vadd.f32 0.0, %v236
    %238 = vmatmul.f32.gmra.mxu0 %v123
    %v239 = vpop.f32.mrf.mxu0
    %v240 = vadd.f32 0.0, %v239
    %241 = vmatmul.f32.gmra.mxu0 %v126
    %v242 = vpop.f32.mrf.mxu0
    %v243 = vadd.f32 0.0, %v242
    %244 = vmatmul.f32.gmra.mxu0 %v129
    %v245 = vpop.f32.mrf.mxu0
    %v246 = vadd.f32 0.0, %v245
    %247 = vmatmul.f32.gmra.mxu0 %v132
    %v248 = vpop.f32.mrf.mxu0
    %v249 = vadd.f32 0.0, %v248
    %250 = vmatmul.f32.gmra.mxu0 %v135
    %v251 = vpop.f32.mrf.mxu0
    %v252 = vadd.f32 0.0, %v251
    %253 = vmatmul.f32.gmra.mxu0 %v138
    %v254 = vpop.f32.mrf.mxu0
    %v255 = vadd.f32 0.0, %v254
    %256 = vmatmul.f32.gmra.mxu0 %v141
    %v257 = vpop.f32.mrf.mxu0
    %v258 = vadd.f32 0.0, %v257
    %259 = vmatmul.f32.gmra.mxu0 %v144
    %v260 = vpop.f32.mrf.mxu0
    %v261 = vadd.f32 0.0, %v260
    %262 = vmatmul.f32.gmra.mxu0 %v147
    %v263 = vpop.f32.mrf.mxu0
    %v264 = vadd.f32 0.0, %v263
    %265 = vmatmul.f32.gmra.mxu0 %v150
    %v266 = vpop.f32.mrf.mxu0
    %v267 = vadd.f32 0.0, %v266
    %268 = vmatmul.f32.gmra.mxu0 %v153
    %v269 = vpop.f32.mrf.mxu0
    %v270 = vadd.f32 0.0, %v269
    %271 = vmatmul.f32.gmra.mxu0 %v156
    %v272 = vpop.f32.mrf.mxu0
    %v273 = vadd.f32 0.0, %v272
    %274 = vmatmul.f32.gmra.mxu0 %v159
    %v275 = vpop.f32.mrf.mxu0
    %v276 = vadd.f32 0.0, %v275
    %277 = vmatmul.f32.gmra.mxu0 %v162
    %v278 = vpop.f32.mrf.mxu0
    %v279 = vadd.f32 0.0, %v278
    %280 = vmatmul.f32.gmra.mxu0 %v165
    %v281 = vpop.f32.mrf.mxu0
    %v282 = vadd.f32 0.0, %v281
    %283 = vmatmul.f32.gmra.mxu0 %v168
    %v284 = vpop.f32.mrf.mxu0
    %v285 = vadd.f32 0.0, %v284
    %286 = vmatmul.f32.gmra.mxu0 %v171
    %v287 = vpop.f32.mrf.mxu0
    %v288 = vadd.f32 0.0, %v287
    %289 = vdwg.mxu0
    %v290 = vld [vmem:[%s2] sm:$0x1]
    %v292 = vperm.slane %v290, 0
    %v294 = vadd.f32 %v195, %v292
    %v295 = vadd.f32 %v198, %v292
    %v296 = vadd.f32 %v201, %v292
    %v297 = vadd.f32 %v204, %v292
    %v298 = vadd.f32 %v207, %v292
    %v299 = vadd.f32 %v210, %v292
    %v300 = vadd.f32 %v213, %v292
    %v301 = vadd.f32 %v216, %v292
    %v302 = vadd.f32 %v219, %v292
    %v303 = vadd.f32 %v222, %v292
    %v304 = vadd.f32 %v225, %v292
    %v305 = vadd.f32 %v228, %v292
    %v306 = vadd.f32 %v231, %v292
    %v307 = vadd.f32 %v234, %v292
    %v308 = vadd.f32 %v237, %v292
    %v309 = vadd.f32 %v240, %v292
    %v310 = vadd.f32 %v243, %v292
    %v311 = vadd.f32 %v246, %v292
    %v312 = vadd.f32 %v249, %v292
    %v313 = vadd.f32 %v252, %v292
    %v314 = vadd.f32 %v255, %v292
    %v315 = vadd.f32 %v258, %v292
    %v316 = vadd.f32 %v261, %v292
    %v317 = vadd.f32 %v264, %v292
    %v318 = vadd.f32 %v267, %v292
    %v319 = vadd.f32 %v270, %v292
    %v320 = vadd.f32 %v273, %v292
    %v321 = vadd.f32 %v276, %v292
    %v322 = vadd.f32 %v279, %v292
    %v323 = vadd.f32 %v282, %v292
    %v324 = vadd.f32 %v285, %v292
    %v325 = vadd.f32 %v288, %v292
    %v326 = vmax.f32 %v294, 0.0
    %v327 = vmax.f32 %v295, 0.0
    %v328 = vmax.f32 %v296, 0.0
    %v329 = vmax.f32 %v297, 0.0
    %v330 = vmax.f32 %v298, 0.0
    %v331 = vmax.f32 %v299, 0.0
    %v332 = vmax.f32 %v300, 0.0
    %v333 = vmax.f32 %v301, 0.0
    %v334 = vmax.f32 %v302, 0.0
    %v335 = vmax.f32 %v303, 0.0
    %v336 = vmax.f32 %v304, 0.0
    %v337 = vmax.f32 %v305, 0.0
    %v338 = vmax.f32 %v306, 0.0
    %v339 = vmax.f32 %v307, 0.0
    %v340 = vmax.f32 %v308, 0.0
    %v341 = vmax.f32 %v309, 0.0
    %v342 = vmax.f32 %v310, 0.0
    %v343 = vmax.f32 %v311, 0.0
    %v344 = vmax.f32 %v312, 0.0
    %v345 = vmax.f32 %v313, 0.0
    %v346 = vmax.f32 %v314, 0.0
    %v347 = vmax.f32 %v315, 0.0
    %v348 = vmax.f32 %v316, 0.0
    %v349 = vmax.f32 %v317, 0.0
    %v350 = vmax.f32 %v318, 0.0
    %v351 = vmax.f32 %v319, 0.0
    %v352 = vmax.f32 %v320, 0.0
    %v353 = vmax.f32 %v321, 0.0
    %v354 = vmax.f32 %v322, 0.0
    %v355 = vmax.f32 %v323, 0.0
    %v356 = vmax.f32 %v324, 0.0
    %v357 = vmax.f32 %v325, 0.0
    %v358 = vsel %vm76, %v326, -inf
    %v359 = vsel %vm76, %v328, -inf
    %v360 = vsel %vm76, %v330, -inf
    %v361 = vmax.f32 %v358, %v360
    %v362 = vsel %vm76, %v332, -inf
    %v363 = vmax.f32 %v359, %v362
    %v364 = vsel %vm76, %v334, -inf
    %v365 = vmax.f32 %v361, %v364
    %v366 = vsel %vm76, %v336, -inf
    %v367 = vmax.f32 %v363, %v366
    %v368 = vsel %vm76, %v338, -inf
    %v369 = vmax.f32 %v365, %v368
    %v370 = vsel %vm76, %v340, -inf
    %v371 = vmax.f32 %v367, %v370
    %v372 = vsel %vm76, %v342, -inf
    %v373 = vmax.f32 %v369, %v372
    %v374 = vsel %vm76, %v344, -inf
    %v375 = vmax.f32 %v371, %v374
    %v376 = vsel %vm76, %v346, -inf
    %v377 = vmax.f32 %v373, %v376
    %v378 = vsel %vm76, %v348, -inf
    %v379 = vmax.f32 %v375, %v378
    %v380 = vsel %vm76, %v350, -inf
    %v381 = vmax.f32 %v377, %v380
    %v382 = vsel %vm76, %v352, -inf
    %v383 = vmax.f32 %v379, %v382
    %v384 = vsel %vm76, %v354, -inf
    %v385 = vmax.f32 %v381, %v384
    %v386 = vsel %vm76, %v356, -inf
    %v387 = vmax.f32 %v383, %v386
    %v388 = vmax.f32 %v385, %v387
    %v389 = vsel %vm76, %v327, -inf
    %v390 = vsel %vm76, %v329, -inf
    %v391 = vsel %vm76, %v331, -inf
    %v392 = vmax.f32 %v389, %v391
    %v393 = vsel %vm76, %v333, -inf
    %v394 = vmax.f32 %v390, %v393
    %v395 = vsel %vm76, %v335, -inf
    %v396 = vmax.f32 %v392, %v395
    %v397 = vsel %vm76, %v337, -inf
    %v398 = vmax.f32 %v394, %v397
    %v399 = vsel %vm76, %v339, -inf
    %v400 = vmax.f32 %v396, %v399
    %v401 = vsel %vm76, %v341, -inf
    %v402 = vmax.f32 %v398, %v401
    %v403 = vsel %vm76, %v343, -inf
    %v404 = vmax.f32 %v400, %v403
    %v405 = vsel %vm76, %v345, -inf
    %v406 = vmax.f32 %v402, %v405
    %v407 = vsel %vm76, %v347, -inf
    %v408 = vmax.f32 %v404, %v407
    %v409 = vsel %vm76, %v349, -inf
    %v410 = vmax.f32 %v406, %v409
    %v411 = vsel %vm76, %v351, -inf
    %v412 = vmax.f32 %v408, %v411
    %v413 = vsel %vm76, %v353, -inf
    %v414 = vmax.f32 %v410, %v413
    %v415 = vsel %vm76, %v355, -inf
    %v416 = vmax.f32 %v412, %v415
    %v417 = vsel %vm76, %v357, -inf
    %v418 = vmax.f32 %v414, %v417
    %v419 = vmax.f32 %v416, %v418
    %v420 = vld [vmem:[%s3] sm:$0xff]
    %v421 = vld [vmem:[%s3 + $0x8] sm:$0x3f]
    %v423 = vsel %vm76, %v326, 0
    %v426 = vsel %vm76, %v327, 0
    %v429 = vsel %vm76, %v328, 0
    %v432 = vsel %vm76, %v329, 0
    %v435 = vsel %vm76, %v330, 0
    %v438 = vsel %vm76, %v331, 0
    %v441 = vsel %vm76, %v332, 0
    %v444 = vsel %vm76, %v333, 0
    %v447 = vsel %vm76, %v334, 0
    %v450 = vsel %vm76, %v335, 0
    %v453 = vsel %vm76, %v336, 0
    %v456 = vsel %vm76, %v337, 0
    %v459 = vsel %vm76, %v338, 0
    %v462 = vsel %vm76, %v339, 0
    %v465 = vsel %vm76, %v340, 0
    %v468 = vsel %vm76, %v341, 0
    %v471 = vsel %vm76, %v342, 0
    %v474 = vsel %vm76, %v343, 0
    %v477 = vsel %vm76, %v344, 0
    %v480 = vsel %vm76, %v345, 0
    %v483 = vsel %vm76, %v346, 0
    %v486 = vsel %vm76, %v347, 0
    %v489 = vsel %vm76, %v348, 0
    %v492 = vsel %vm76, %v349, 0
    %v495 = vsel %vm76, %v350, 0
    %v498 = vsel %vm76, %v351, 0
    %v501 = vsel %vm76, %v352, 0
    %v504 = vsel %vm76, %v353, 0
    %v507 = vsel %vm76, %v354, 0
    %v510 = vsel %vm76, %v355, 0
    %v513 = vsel %vm76, %v356, 0
    %v516 = vsel %vm76, %v357, 0
    %v519 = vsel %vm173, %v421, 0
    %521 = vmatpush.msra.mxu0 0.0
    %522 = vmatpush.msra.mxu0 0.0
    %523 = vmatpush.msra.mxu0 0.0
    %524 = vmatpush.msra.mxu0 0.0
    %525 = vmatpush.msra.mxu0 0.0
    %526 = vmatpush.msra.mxu0 0.0
    %527 = vmatpush.msra.mxu0 0.0
    %528 = vmatpush.msra.mxu0 0.0
    %529 = vmatpush.msra.mxu0 0.0
    %530 = vmatpush.msra.mxu0 0.0
    %531 = vmatpush.msra.mxu0 0.0
    %532 = vmatpush.msra.mxu0 0.0
    %533 = vmatpush.msra.mxu0 0.0
    %534 = vmatpush.msra.mxu0 0.0
    %535 = vmatpush.msra.mxu0 %v519
    %536 = vmatpush.msra.mxu0 %v420
    %537 = vmatmul.f32.gmra.mxu0 %v423
    %v538 = vpop.f32.mrf.mxu0
    %v539 = vadd.f32 0.0, %v538
    %540 = vmatmul.f32.gmra.mxu0 %v426
    %v541 = vpop.f32.mrf.mxu0
    %v542 = vadd.f32 0.0, %v541
    %543 = vmatmul.f32.gmra.mxu0 %v429
    %v544 = vpop.f32.mrf.mxu0
    %v545 = vadd.f32 0.0, %v544
    %546 = vmatmul.f32.gmra.mxu0 %v432
    %v547 = vpop.f32.mrf.mxu0
    %v548 = vadd.f32 0.0, %v547
    %549 = vmatmul.f32.gmra.mxu0 %v435
    %v550 = vpop.f32.mrf.mxu0
    %v551 = vadd.f32 0.0, %v550
    %552 = vmatmul.f32.gmra.mxu0 %v438
    %v553 = vpop.f32.mrf.mxu0
    %v554 = vadd.f32 0.0, %v553
    %555 = vmatmul.f32.gmra.mxu0 %v441
    %v556 = vpop.f32.mrf.mxu0
    %v557 = vadd.f32 0.0, %v556
    %558 = vmatmul.f32.gmra.mxu0 %v444
    %v559 = vpop.f32.mrf.mxu0
    %v560 = vadd.f32 0.0, %v559
    %561 = vmatmul.f32.gmra.mxu0 %v447
    %v562 = vpop.f32.mrf.mxu0
    %v563 = vadd.f32 0.0, %v562
    %564 = vmatmul.f32.gmra.mxu0 %v450
    %v565 = vpop.f32.mrf.mxu0
    %v566 = vadd.f32 0.0, %v565
    %567 = vmatmul.f32.gmra.mxu0 %v453
    %v568 = vpop.f32.mrf.mxu0
    %v569 = vadd.f32 0.0, %v568
    %570 = vmatmul.f32.gmra.mxu0 %v456
    %v571 = vpop.f32.mrf.mxu0
    %v572 = vadd.f32 0.0, %v571
    %573 = vmatmul.f32.gmra.mxu0 %v459
    %v574 = vpop.f32.mrf.mxu0
    %v575 = vadd.f32 0.0, %v574
    %576 = vmatmul.f32.gmra.mxu0 %v462
    %v577 = vpop.f32.mrf.mxu0
    %v578 = vadd.f32 0.0, %v577
    %579 = vmatmul.f32.gmra.mxu0 %v465
    %v580 = vpop.f32.mrf.mxu0
    %v581 = vadd.f32 0.0, %v580
    %582 = vmatmul.f32.gmra.mxu0 %v468
    %v583 = vpop.f32.mrf.mxu0
    %v584 = vadd.f32 0.0, %v583
    %585 = vmatmul.f32.gmra.mxu0 %v471
    %v586 = vpop.f32.mrf.mxu0
    %v587 = vadd.f32 0.0, %v586
    %588 = vmatmul.f32.gmra.mxu0 %v474
    %v589 = vpop.f32.mrf.mxu0
    %v590 = vadd.f32 0.0, %v589
    %591 = vmatmul.f32.gmra.mxu0 %v477
    %v592 = vpop.f32.mrf.mxu0
    %v593 = vadd.f32 0.0, %v592
    %594 = vmatmul.f32.gmra.mxu0 %v480
    %v595 = vpop.f32.mrf.mxu0
    %v596 = vadd.f32 0.0, %v595
    %597 = vmatmul.f32.gmra.mxu0 %v483
    %v598 = vpop.f32.mrf.mxu0
    %v599 = vadd.f32 0.0, %v598
    %600 = vmatmul.f32.gmra.mxu0 %v486
    %v601 = vpop.f32.mrf.mxu0
    %v602 = vadd.f32 0.0, %v601
    %603 = vmatmul.f32.gmra.mxu0 %v489
    %v604 = vpop.f32.mrf.mxu0
    %v605 = vadd.f32 0.0, %v604
    %606 = vmatmul.f32.gmra.mxu0 %v492
    %v607 = vpop.f32.mrf.mxu0
    %v608 = vadd.f32 0.0, %v607
    %609 = vmatmul.f32.gmra.mxu0 %v495
    %v610 = vpop.f32.mrf.mxu0
    %v611 = vadd.f32 0.0, %v610
    %612 = vmatmul.f32.gmra.mxu0 %v498
    %v613 = vpop.f32.mrf.mxu0
    %v614 = vadd.f32 0.0, %v613
    %615 = vmatmul.f32.gmra.mxu0 %v501
    %v616 = vpop.f32.mrf.mxu0
    %v617 = vadd.f32 0.0, %v616
    %618 = vmatmul.f32.gmra.mxu0 %v504
    %v619 = vpop.f32.mrf.mxu0
    %v620 = vadd.f32 0.0, %v619
    %621 = vmatmul.f32.gmra.mxu0 %v507
    %v622 = vpop.f32.mrf.mxu0
    %v623 = vadd.f32 0.0, %v622
    %624 = vmatmul.f32.gmra.mxu0 %v510
    %v625 = vpop.f32.mrf.mxu0
    %v626 = vadd.f32 0.0, %v625
    %627 = vmatmul.f32.gmra.mxu0 %v513
    %v628 = vpop.f32.mrf.mxu0
    %v629 = vadd.f32 0.0, %v628
    %630 = vmatmul.f32.gmra.mxu0 %v516
    %v631 = vpop.f32.mrf.mxu0
    %v632 = vadd.f32 0.0, %v631
    %633 = vdwg.mxu0
    %v634 = vld [vmem:[%s4] sm:$0xff]
    %v635 = vld [vmem:[%s4 + $0x8] sm:$0x3f]
    %v637 = vsel %vm76, %v388, 0
    %v640 = vsel %vm76, %v419, 0
    %v643 = vsel %vm173, %v635, 0
    %645 = vmatpush.msra.mxu0 0.0
    %646 = vmatpush.msra.mxu0 0.0
    %647 = vmatpush.msra.mxu0 0.0
    %648 = vmatpush.msra.mxu0 0.0
    %649 = vmatpush.msra.mxu0 0.0
    %650 = vmatpush.msra.mxu0 0.0
    %651 = vmatpush.msra.mxu0 0.0
    %652 = vmatpush.msra.mxu0 0.0
    %653 = vmatpush.msra.mxu0 0.0
    %654 = vmatpush.msra.mxu0 0.0
    %655 = vmatpush.msra.mxu0 0.0
    %656 = vmatpush.msra.mxu0 0.0
    %657 = vmatpush.msra.mxu0 0.0
    %658 = vmatpush.msra.mxu0 0.0
    %659 = vmatpush.msra.mxu0 %v643
    %660 = vmatpush.msra.mxu0 %v634
    %661 = vmatmul.f32.gmra.mxu0 %v637
    %v662 = vpop.f32.mrf.mxu0
    %v663 = vadd.f32 0.0, %v662
    %664 = vmatmul.f32.gmra.mxu0 %v640
    %v665 = vpop.f32.mrf.mxu0
    %v666 = vadd.f32 0.0, %v665
    %667 = vdwg.mxu0
    %v668 = vadd.f32 %v539, %v663
    %v669 = vadd.f32 %v542, %v666
    %v670 = vadd.f32 %v545, %v663
    %v671 = vadd.f32 %v548, %v666
    %v672 = vadd.f32 %v551, %v663
    %v673 = vadd.f32 %v554, %v666
    %v674 = vadd.f32 %v557, %v663
    %v675 = vadd.f32 %v560, %v666
    %v676 = vadd.f32 %v563, %v663
    %v677 = vadd.f32 %v566, %v666
    %v678 = vadd.f32 %v569, %v663
    %v679 = vadd.f32 %v572, %v666
    %v680 = vadd.f32 %v575, %v663
    %v681 = vadd.f32 %v578, %v666
    %v682 = vadd.f32 %v581, %v663
    %v683 = vadd.f32 %v584, %v666
    %v684 = vadd.f32 %v587, %v663
    %v685 = vadd.f32 %v590, %v666
    %v686 = vadd.f32 %v593, %v663
    %v687 = vadd.f32 %v596, %v666
    %v688 = vadd.f32 %v599, %v663
    %v689 = vadd.f32 %v602, %v666
    %v690 = vadd.f32 %v605, %v663
    %v691 = vadd.f32 %v608, %v666
    %v692 = vadd.f32 %v611, %v663
    %v693 = vadd.f32 %v614, %v666
    %v694 = vadd.f32 %v617, %v663
    %v695 = vadd.f32 %v620, %v666
    %v696 = vadd.f32 %v623, %v663
    %v697 = vadd.f32 %v626, %v666
    %v698 = vadd.f32 %v629, %v663
    %v699 = vadd.f32 %v632, %v666
    %v700 = vld [vmem:[%s5] sm:$0x1]
    %v702 = vperm.slane %v700, 0
    %v704 = vadd.f32 %v668, %v702
    %v705 = vadd.f32 %v669, %v702
    %v706 = vadd.f32 %v670, %v702
    %v707 = vadd.f32 %v671, %v702
    %v708 = vadd.f32 %v672, %v702
    %v709 = vadd.f32 %v673, %v702
    %v710 = vadd.f32 %v674, %v702
    %v711 = vadd.f32 %v675, %v702
    %v712 = vadd.f32 %v676, %v702
    %v713 = vadd.f32 %v677, %v702
    %v714 = vadd.f32 %v678, %v702
    %v715 = vadd.f32 %v679, %v702
    %v716 = vadd.f32 %v680, %v702
    %v717 = vadd.f32 %v681, %v702
    %v718 = vadd.f32 %v682, %v702
    %v719 = vadd.f32 %v683, %v702
    %v720 = vadd.f32 %v684, %v702
    %v721 = vadd.f32 %v685, %v702
    %v722 = vadd.f32 %v686, %v702
    %v723 = vadd.f32 %v687, %v702
    %v724 = vadd.f32 %v688, %v702
    %v725 = vadd.f32 %v689, %v702
    %v726 = vadd.f32 %v690, %v702
    %v727 = vadd.f32 %v691, %v702
    %v728 = vadd.f32 %v692, %v702
    %v729 = vadd.f32 %v693, %v702
    %v730 = vadd.f32 %v694, %v702
    %v731 = vadd.f32 %v695, %v702
    %v732 = vadd.f32 %v696, %v702
    %v733 = vadd.f32 %v697, %v702
    %v734 = vadd.f32 %v698, %v702
    %v735 = vadd.f32 %v699, %v702
    %v736 = vmax.f32 %v704, 0.0
    %v737 = vmax.f32 %v705, 0.0
    %v738 = vmax.f32 %v706, 0.0
    %v739 = vmax.f32 %v707, 0.0
    %v740 = vmax.f32 %v708, 0.0
    %v741 = vmax.f32 %v709, 0.0
    %v742 = vmax.f32 %v710, 0.0
    %v743 = vmax.f32 %v711, 0.0
    %v744 = vmax.f32 %v712, 0.0
    %v745 = vmax.f32 %v713, 0.0
    %v746 = vmax.f32 %v714, 0.0
    %v747 = vmax.f32 %v715, 0.0
    %v748 = vmax.f32 %v716, 0.0
    %v749 = vmax.f32 %v717, 0.0
    %v750 = vmax.f32 %v718, 0.0
    %v751 = vmax.f32 %v719, 0.0
    %v752 = vmax.f32 %v720, 0.0
    %v753 = vmax.f32 %v721, 0.0
    %v754 = vmax.f32 %v722, 0.0
    %v755 = vmax.f32 %v723, 0.0
    %v756 = vmax.f32 %v724, 0.0
    %v757 = vmax.f32 %v725, 0.0
    %v758 = vmax.f32 %v726, 0.0
    %v759 = vmax.f32 %v727, 0.0
    %v760 = vmax.f32 %v728, 0.0
    %v761 = vmax.f32 %v729, 0.0
    %v762 = vmax.f32 %v730, 0.0
    %v763 = vmax.f32 %v731, 0.0
    %v764 = vmax.f32 %v732, 0.0
    %v765 = vmax.f32 %v733, 0.0
    %v766 = vmax.f32 %v734, 0.0
    %v767 = vmax.f32 %v735, 0.0
    %vm768 = vcmask 228352
    %v769 = vsel %vm768, %v736, -inf
    %v770 = vsel %vm768, %v738, -inf
    %v771 = vsel %vm768, %v740, -inf
    %v772 = vmax.f32 %v769, %v771
    %v773 = vsel %vm768, %v742, -inf
    %v774 = vmax.f32 %v770, %v773
    %v775 = vsel %vm768, %v744, -inf
    %v776 = vmax.f32 %v772, %v775
    %v777 = vsel %vm768, %v746, -inf
    %v778 = vmax.f32 %v774, %v777
    %v779 = vsel %vm768, %v748, -inf
    %v780 = vmax.f32 %v776, %v779
    %v781 = vsel %vm768, %v750, -inf
    %v782 = vmax.f32 %v778, %v781
    %v783 = vsel %vm768, %v752, -inf
    %v784 = vmax.f32 %v780, %v783
    %v785 = vsel %vm768, %v754, -inf
    %v786 = vmax.f32 %v782, %v785
    %v787 = vsel %vm768, %v756, -inf
    %v788 = vmax.f32 %v784, %v787
    %v789 = vsel %vm768, %v758, -inf
    %v790 = vmax.f32 %v786, %v789
    %v791 = vsel %vm768, %v760, -inf
    %v792 = vmax.f32 %v788, %v791
    %v793 = vsel %vm768, %v762, -inf
    %v794 = vmax.f32 %v790, %v793
    %v795 = vsel %vm768, %v764, -inf
    %v796 = vmax.f32 %v792, %v795
    %v797 = vsel %vm768, %v766, -inf
    %v798 = vmax.f32 %v794, %v797
    %v799 = vmax.f32 %v796, %v798
    %v800 = vsel %vm768, %v737, -inf
    %v801 = vsel %vm768, %v739, -inf
    %v802 = vsel %vm768, %v741, -inf
    %v803 = vmax.f32 %v800, %v802
    %v804 = vsel %vm768, %v743, -inf
    %v805 = vmax.f32 %v801, %v804
    %v806 = vsel %vm768, %v745, -inf
    %v807 = vmax.f32 %v803, %v806
    %v808 = vsel %vm768, %v747, -inf
    %v809 = vmax.f32 %v805, %v808
    %v810 = vsel %vm768, %v749, -inf
    %v811 = vmax.f32 %v807, %v810
    %v812 = vsel %vm768, %v751, -inf
    %v813 = vmax.f32 %v809, %v812
    %v814 = vsel %vm768, %v753, -inf
    %v815 = vmax.f32 %v811, %v814
    %v816 = vsel %vm768, %v755, -inf
    %v817 = vmax.f32 %v813, %v816
    %v818 = vsel %vm768, %v757, -inf
    %v819 = vmax.f32 %v815, %v818
    %v820 = vsel %vm768, %v759, -inf
    %v821 = vmax.f32 %v817, %v820
    %v822 = vsel %vm768, %v761, -inf
    %v823 = vmax.f32 %v819, %v822
    %v824 = vsel %vm768, %v763, -inf
    %v825 = vmax.f32 %v821, %v824
    %v826 = vsel %vm768, %v765, -inf
    %v827 = vmax.f32 %v823, %v826
    %v828 = vsel %vm768, %v767, -inf
    %v829 = vmax.f32 %v825, %v828
    %v830 = vmax.f32 %v827, %v829
    %v831 = vld [vmem:[%s6] sm:$0xff]
    %v832 = vld [vmem:[%s6 + $0x8] sm:$0xff]
    %v833 = vld [vmem:[%s6 + $0x10] sm:$0xff]
    %v834 = vld [vmem:[%s6 + $0x18] sm:$0xf]
    %v836 = vsel %vm768, %v736, 0
    %v839 = vsel %vm768, %v737, 0
    %v842 = vsel %vm768, %v738, 0
    %v845 = vsel %vm768, %v739, 0
    %v848 = vsel %vm768, %v740, 0
    %v851 = vsel %vm768, %v741, 0
    %v854 = vsel %vm768, %v742, 0
    %v857 = vsel %vm768, %v743, 0
    %v860 = vsel %vm768, %v744, 0
    %v863 = vsel %vm768, %v745, 0
    %v866 = vsel %vm768, %v746, 0
    %v869 = vsel %vm768, %v747, 0
    %v872 = vsel %vm768, %v748, 0
    %v875 = vsel %vm768, %v749, 0
    %v878 = vsel %vm768, %v750, 0
    %v881 = vsel %vm768, %v751, 0
    %v884 = vsel %vm768, %v752, 0
    %v887 = vsel %vm768, %v753, 0
    %v890 = vsel %vm768, %v754, 0
    %v893 = vsel %vm768, %v755, 0
    %v896 = vsel %vm768, %v756, 0
    %v899 = vsel %vm768, %v757, 0
    %v902 = vsel %vm768, %v758, 0
    %v905 = vsel %vm768, %v759, 0
    %v908 = vsel %vm768, %v760, 0
    %v911 = vsel %vm768, %v761, 0
    %v914 = vsel %vm768, %v762, 0
    %v917 = vsel %vm768, %v763, 0
    %v920 = vsel %vm768, %v764, 0
    %v923 = vsel %vm768, %v765, 0
    %v926 = vsel %vm768, %v766, 0
    %v929 = vsel %vm768, %v767, 0
    %vm931 = vcmask 1043456
    %v933 = vsel %vm931, %v834, 0
    %935 = vmatpush.msra.mxu0 0.0
    %936 = vmatpush.msra.mxu0 0.0
    %937 = vmatpush.msra.mxu0 0.0
    %938 = vmatpush.msra.mxu0 0.0
    %939 = vmatpush.msra.mxu0 0.0
    %940 = vmatpush.msra.mxu0 0.0
    %941 = vmatpush.msra.mxu0 0.0
    %942 = vmatpush.msra.mxu0 0.0
    %943 = vmatpush.msra.mxu0 0.0
    %944 = vmatpush.msra.mxu0 0.0
    %945 = vmatpush.msra.mxu0 0.0
    %946 = vmatpush.msra.mxu0 0.0
    %947 = vmatpush.msra.mxu0 %v933
    %948 = vmatpush.msra.mxu0 %v833
    %949 = vmatpush.msra.mxu0 %v832
    %950 = vmatpush.msra.mxu0 %v831
    %951 = vmatmul.f32.gmra.mxu0 %v836
    %v952 = vpop.f32.mrf.mxu0
    %v953 = vadd.f32 0.0, %v952
    %954 = vmatmul.f32.gmra.mxu0 %v839
    %v955 = vpop.f32.mrf.mxu0
    %v956 = vadd.f32 0.0, %v955
    %957 = vmatmul.f32.gmra.mxu0 %v842
    %v958 = vpop.f32.mrf.mxu0
    %v959 = vadd.f32 0.0, %v958
    %960 = vmatmul.f32.gmra.mxu0 %v845
    %v961 = vpop.f32.mrf.mxu0
    %v962 = vadd.f32 0.0, %v961
    %963 = vmatmul.f32.gmra.mxu0 %v848
    %v964 = vpop.f32.mrf.mxu0
    %v965 = vadd.f32 0.0, %v964
    %966 = vmatmul.f32.gmra.mxu0 %v851
    %v967 = vpop.f32.mrf.mxu0
    %v968 = vadd.f32 0.0, %v967
    %969 = vmatmul.f32.gmra.mxu0 %v854
    %v970 = vpop.f32.mrf.mxu0
    %v971 = vadd.f32 0.0, %v970
    %972 = vmatmul.f32.gmra.mxu0 %v857
    %v973 = vpop.f32.mrf.mxu0
    %v974 = vadd.f32 0.0, %v973
    %975 = vmatmul.f32.gmra.mxu0 %v860
    %v976 = vpop.f32.mrf.mxu0
    %v977 = vadd.f32 0.0, %v976
    %978 = vmatmul.f32.gmra.mxu0 %v863
    %v979 = vpop.f32.mrf.mxu0
    %v980 = vadd.f32 0.0, %v979
    %981 = vmatmul.f32.gmra.mxu0 %v866
    %v982 = vpop.f32.mrf.mxu0
    %v983 = vadd.f32 0.0, %v982
    %984 = vmatmul.f32.gmra.mxu0 %v869
    %v985 = vpop.f32.mrf.mxu0
    %v986 = vadd.f32 0.0, %v985
    %987 = vmatmul.f32.gmra.mxu0 %v872
    %v988 = vpop.f32.mrf.mxu0
    %v989 = vadd.f32 0.0, %v988
    %990 = vmatmul.f32.gmra.mxu0 %v875
    %v991 = vpop.f32.mrf.mxu0
    %v992 = vadd.f32 0.0, %v991
    %993 = vmatmul.f32.gmra.mxu0 %v878
    %v994 = vpop.f32.mrf.mxu0
    %v995 = vadd.f32 0.0, %v994
    %996 = vmatmul.f32.gmra.mxu0 %v881
    %v997 = vpop.f32.mrf.mxu0
    %v998 = vadd.f32 0.0, %v997
    %999 = vmatmul.f32.gmra.mxu0 %v884
    %v1000 = vpop.f32.mrf.mxu0
    %v1001 = vadd.f32 0.0, %v1000
    %1002 = vmatmul.f32.gmra.mxu0 %v887
    %v1003 = vpop.f32.mrf.mxu0
    %v1004 = vadd.f32 0.0, %v1003
    %1005 = vmatmul.f32.gmra.mxu0 %v890
    %v1006 = vpop.f32.mrf.mxu0
    %v1007 = vadd.f32 0.0, %v1006
    %1008 = vmatmul.f32.gmra.mxu0 %v893
    %v1009 = vpop.f32.mrf.mxu0
    %v1010 = vadd.f32 0.0, %v1009
    %1011 = vmatmul.f32.gmra.mxu0 %v896
    %v1012 = vpop.f32.mrf.mxu0
    %v1013 = vadd.f32 0.0, %v1012
    %1014 = vmatmul.f32.gmra.mxu0 %v899
    %v1015 = vpop.f32.mrf.mxu0
    %v1016 = vadd.f32 0.0, %v1015
    %1017 = vmatmul.f32.gmra.mxu0 %v902
    %v1018 = vpop.f32.mrf.mxu0
    %v1019 = vadd.f32 0.0, %v1018
    %1020 = vmatmul.f32.gmra.mxu0 %v905
    %v1021 = vpop.f32.mrf.mxu0
    %v1022 = vadd.f32 0.0, %v1021
    %1023 = vmatmul.f32.gmra.mxu0 %v908
    %v1024 = vpop.f32.mrf.mxu0
    %v1025 = vadd.f32 0.0, %v1024
    %1026 = vmatmul.f32.gmra.mxu0 %v911
    %v1027 = vpop.f32.mrf.mxu0
    %v1028 = vadd.f32 0.0, %v1027
    %1029 = vmatmul.f32.gmra.mxu0 %v914
    %v1030 = vpop.f32.mrf.mxu0
    %v1031 = vadd.f32 0.0, %v1030
    %1032 = vmatmul.f32.gmra.mxu0 %v917
    %v1033 = vpop.f32.mrf.mxu0
    %v1034 = vadd.f32 0.0, %v1033
    %1035 = vmatmul.f32.gmra.mxu0 %v920
    %v1036 = vpop.f32.mrf.mxu0
    %v1037 = vadd.f32 0.0, %v1036
    %1038 = vmatmul.f32.gmra.mxu0 %v923
    %v1039 = vpop.f32.mrf.mxu0
    %v1040 = vadd.f32 0.0, %v1039
    %1041 = vmatmul.f32.gmra.mxu0 %v926
    %v1042 = vpop.f32.mrf.mxu0
    %v1043 = vadd.f32 0.0, %v1042
    %1044 = vmatmul.f32.gmra.mxu0 %v929
    %v1045 = vpop.f32.mrf.mxu0
    %v1046 = vadd.f32 0.0, %v1045
    %1047 = vdwg.mxu0
    %v1048 = vld [vmem:[%s7] sm:$0xff]
    %v1049 = vld [vmem:[%s7 + $0x8] sm:$0xff]
    %v1050 = vld [vmem:[%s7 + $0x10] sm:$0xff]
    %v1051 = vld [vmem:[%s7 + $0x18] sm:$0xf]
    %v1053 = vsel %vm768, %v799, 0
    %v1056 = vsel %vm768, %v830, 0
    %v1059 = vsel %vm931, %v1051, 0
    %1061 = vmatpush.msra.mxu0 0.0
    %1062 = vmatpush.msra.mxu0 0.0
    %1063 = vmatpush.msra.mxu0 0.0
    %1064 = vmatpush.msra.mxu0 0.0
    %1065 = vmatpush.msra.mxu0 0.0
    %1066 = vmatpush.msra.mxu0 0.0
    %1067 = vmatpush.msra.mxu0 0.0
    %1068 = vmatpush.msra.mxu0 0.0
    %1069 = vmatpush.msra.mxu0 0.0
    %1070 = vmatpush.msra.mxu0 0.0
    %1071 = vmatpush.msra.mxu0 0.0
    %1072 = vmatpush.msra.mxu0 0.0
    %1073 = vmatpush.msra.mxu0 %v1059
    %1074 = vmatpush.msra.mxu0 %v1050
    %1075 = vmatpush.msra.mxu0 %v1049
    %1076 = vmatpush.msra.mxu0 %v1048
    %1077 = vmatmul.f32.gmra.mxu0 %v1053
    %v1078 = vpop.f32.mrf.mxu0
    %v1079 = vadd.f32 0.0, %v1078
    %1080 = vmatmul.f32.gmra.mxu0 %v1056
    %v1081 = vpop.f32.mrf.mxu0
    %v1082 = vadd.f32 0.0, %v1081
    %1083 = vdwg.mxu0
    %v1084 = vadd.f32 %v953, %v1079
    %v1085 = vadd.f32 %v956, %v1082
    %v1086 = vadd.f32 %v959, %v1079
    %v1087 = vadd.f32 %v962, %v1082
    %v1088 = vadd.f32 %v965, %v1079
    %v1089 = vadd.f32 %v968, %v1082
    %v1090 = vadd.f32 %v971, %v1079
    %v1091 = vadd.f32 %v974, %v1082
    %v1092 = vadd.f32 %v977, %v1079
    %v1093 = vadd.f32 %v980, %v1082
    %v1094 = vadd.f32 %v983, %v1079
    %v1095 = vadd.f32 %v986, %v1082
    %v1096 = vadd.f32 %v989, %v1079
    %v1097 = vadd.f32 %v992, %v1082
    %v1098 = vadd.f32 %v995, %v1079
    %v1099 = vadd.f32 %v998, %v1082
    %v1100 = vadd.f32 %v1001, %v1079
    %v1101 = vadd.f32 %v1004, %v1082
    %v1102 = vadd.f32 %v1007, %v1079
    %v1103 = vadd.f32 %v1010, %v1082
    %v1104 = vadd.f32 %v1013, %v1079
    %v1105 = vadd.f32 %v1016, %v1082
    %v1106 = vadd.f32 %v1019, %v1079
    %v1107 = vadd.f32 %v1022, %v1082
    %v1108 = vadd.f32 %v1025, %v1079
    %v1109 = vadd.f32 %v1028, %v1082
    %v1110 = vadd.f32 %v1031, %v1079
    %v1111 = vadd.f32 %v1034, %v1082
    %v1112 = vadd.f32 %v1037, %v1079
    %v1113 = vadd.f32 %v1040, %v1082
    %v1114 = vadd.f32 %v1043, %v1079
    %v1115 = vadd.f32 %v1046, %v1082
    %v1116 = vld [vmem:[%s8] sm:$0x1]
    %v1118 = vperm.slane %v1116, 0
    %v1120 = vadd.f32 %v1084, %v1118
    %v1121 = vadd.f32 %v1085, %v1118
    %v1122 = vadd.f32 %v1086, %v1118
    %v1123 = vadd.f32 %v1087, %v1118
    %v1124 = vadd.f32 %v1088, %v1118
    %v1125 = vadd.f32 %v1089, %v1118
    %v1126 = vadd.f32 %v1090, %v1118
    %v1127 = vadd.f32 %v1091, %v1118
    %v1128 = vadd.f32 %v1092, %v1118
    %v1129 = vadd.f32 %v1093, %v1118
    %v1130 = vadd.f32 %v1094, %v1118
    %v1131 = vadd.f32 %v1095, %v1118
    %v1132 = vadd.f32 %v1096, %v1118
    %v1133 = vadd.f32 %v1097, %v1118
    %v1134 = vadd.f32 %v1098, %v1118
    %v1135 = vadd.f32 %v1099, %v1118
    %v1136 = vadd.f32 %v1100, %v1118
    %v1137 = vadd.f32 %v1101, %v1118
    %v1138 = vadd.f32 %v1102, %v1118
    %v1139 = vadd.f32 %v1103, %v1118
    %v1140 = vadd.f32 %v1104, %v1118
    %v1141 = vadd.f32 %v1105, %v1118
    %v1142 = vadd.f32 %v1106, %v1118
    %v1143 = vadd.f32 %v1107, %v1118
    %v1144 = vadd.f32 %v1108, %v1118
    %v1145 = vadd.f32 %v1109, %v1118
    %v1146 = vadd.f32 %v1110, %v1118
    %v1147 = vadd.f32 %v1111, %v1118
    %v1148 = vadd.f32 %v1112, %v1118
    %v1149 = vadd.f32 %v1113, %v1118
    %v1150 = vadd.f32 %v1114, %v1118
    %v1151 = vadd.f32 %v1115, %v1118
    %v1152 = vmax.f32 %v1120, 0.0
    %v1153 = vmax.f32 %v1121, 0.0
    %v1154 = vmax.f32 %v1122, 0.0
    %v1155 = vmax.f32 %v1123, 0.0
    %v1156 = vmax.f32 %v1124, 0.0
    %v1157 = vmax.f32 %v1125, 0.0
    %v1158 = vmax.f32 %v1126, 0.0
    %v1159 = vmax.f32 %v1127, 0.0
    %v1160 = vmax.f32 %v1128, 0.0
    %v1161 = vmax.f32 %v1129, 0.0
    %v1162 = vmax.f32 %v1130, 0.0
    %v1163 = vmax.f32 %v1131, 0.0
    %v1164 = vmax.f32 %v1132, 0.0
    %v1165 = vmax.f32 %v1133, 0.0
    %v1166 = vmax.f32 %v1134, 0.0
    %v1167 = vmax.f32 %v1135, 0.0
    %v1168 = vmax.f32 %v1136, 0.0
    %v1169 = vmax.f32 %v1137, 0.0
    %v1170 = vmax.f32 %v1138, 0.0
    %v1171 = vmax.f32 %v1139, 0.0
    %v1172 = vmax.f32 %v1140, 0.0
    %v1173 = vmax.f32 %v1141, 0.0
    %v1174 = vmax.f32 %v1142, 0.0
    %v1175 = vmax.f32 %v1143, 0.0
    %v1176 = vmax.f32 %v1144, 0.0
    %v1177 = vmax.f32 %v1145, 0.0
    %v1178 = vmax.f32 %v1146, 0.0
    %v1179 = vmax.f32 %v1147, 0.0
    %v1180 = vmax.f32 %v1148, 0.0
    %v1181 = vmax.f32 %v1149, 0.0
    %v1182 = vmax.f32 %v1150, 0.0
    %v1183 = vmax.f32 %v1151, 0.0
    %vm1184 = vcmask 457728
    %v1185 = vsel %vm1184, %v1152, -inf
    %v1186 = vsel %vm1184, %v1154, -inf
    %v1187 = vsel %vm1184, %v1156, -inf
    %v1188 = vmax.f32 %v1185, %v1187
    %v1189 = vsel %vm1184, %v1158, -inf
    %v1190 = vmax.f32 %v1186, %v1189
    %v1191 = vsel %vm1184, %v1160, -inf
    %v1192 = vmax.f32 %v1188, %v1191
    %v1193 = vsel %vm1184, %v1162, -inf
    %v1194 = vmax.f32 %v1190, %v1193
    %v1195 = vsel %vm1184, %v1164, -inf
    %v1196 = vmax.f32 %v1192, %v1195
    %v1197 = vsel %vm1184, %v1166, -inf
    %v1198 = vmax.f32 %v1194, %v1197
    %v1199 = vsel %vm1184, %v1168, -inf
    %v1200 = vmax.f32 %v1196, %v1199
    %v1201 = vsel %vm1184, %v1170, -inf
    %v1202 = vmax.f32 %v1198, %v1201
    %v1203 = vsel %vm1184, %v1172, -inf
    %v1204 = vmax.f32 %v1200, %v1203
    %v1205 = vsel %vm1184, %v1174, -inf
    %v1206 = vmax.f32 %v1202, %v1205
    %v1207 = vsel %vm1184, %v1176, -inf
    %v1208 = vmax.f32 %v1204, %v1207
    %v1209 = vsel %vm1184, %v1178, -inf
    %v1210 = vmax.f32 %v1206, %v1209
    %v1211 = vsel %vm1184, %v1180, -inf
    %v1212 = vmax.f32 %v1208, %v1211
    %v1213 = vsel %vm1184, %v1182, -inf
    %v1214 = vmax.f32 %v1210, %v1213
    %v1215 = vmax.f32 %v1212, %v1214
    %v1216 = vsel %vm1184, %v1153, -inf
    %v1217 = vsel %vm1184, %v1155, -inf
    %v1218 = vsel %vm1184, %v1157, -inf
    %v1219 = vmax.f32 %v1216, %v1218
    %v1220 = vsel %vm1184, %v1159, -inf
    %v1221 = vmax.f32 %v1217, %v1220
    %v1222 = vsel %vm1184, %v1161, -inf
    %v1223 = vmax.f32 %v1219, %v1222
    %v1224 = vsel %vm1184, %v1163, -inf
    %v1225 = vmax.f32 %v1221, %v1224
    %v1226 = vsel %vm1184, %v1165, -inf
    %v1227 = vmax.f32 %v1223, %v1226
    %v1228 = vsel %vm1184, %v1167, -inf
    %v1229 = vmax.f32 %v1225, %v1228
    %v1230 = vsel %vm1184, %v1169, -inf
    %v1231 = vmax.f32 %v1227, %v1230
    %v1232 = vsel %vm1184, %v1171, -inf
    %v1233 = vmax.f32 %v1229, %v1232
    %v1234 = vsel %vm1184, %v1173, -inf
    %v1235 = vmax.f32 %v1231, %v1234
    %v1236 = vsel %vm1184, %v1175, -inf
    %v1237 = vmax.f32 %v1233, %v1236
    %v1238 = vsel %vm1184, %v1177, -inf
    %v1239 = vmax.f32 %v1235, %v1238
    %v1240 = vsel %vm1184, %v1179, -inf
    %v1241 = vmax.f32 %v1237, %v1240
    %v1242 = vsel %vm1184, %v1181, -inf
    %v1243 = vmax.f32 %v1239, %v1242
    %v1244 = vsel %vm1184, %v1183, -inf
    %v1245 = vmax.f32 %v1241, %v1244
    %v1246 = vmax.f32 %v1243, %v1245
    %v1247 = vld [vmem:[%s9] sm:$0xff]
    %v1248 = vld [vmem:[%s9 + $0x8] sm:$0xff]
    %v1249 = vld [vmem:[%s9 + $0x10] sm:$0xff]
    %v1250 = vld [vmem:[%s9 + $0x18] sm:$0xff]
    %v1251 = vld [vmem:[%s9 + $0x20] sm:$0xff]
    %v1252 = vld [vmem:[%s9 + $0x28] sm:$0xff]
    %v1253 = vld [vmem:[%s9 + $0x30] sm:$0xff]
    %v1255 = vsel %vm1184, %v1152, 0
    %v1258 = vsel %vm1184, %v1153, 0
    %v1261 = vsel %vm1184, %v1154, 0
    %v1264 = vsel %vm1184, %v1155, 0
    %v1267 = vsel %vm1184, %v1156, 0
    %v1270 = vsel %vm1184, %v1157, 0
    %v1273 = vsel %vm1184, %v1158, 0
    %v1276 = vsel %vm1184, %v1159, 0
    %v1279 = vsel %vm1184, %v1160, 0
    %v1282 = vsel %vm1184, %v1161, 0
    %v1285 = vsel %vm1184, %v1162, 0
    %v1288 = vsel %vm1184, %v1163, 0
    %v1291 = vsel %vm1184, %v1164, 0
    %v1294 = vsel %vm1184, %v1165, 0
    %v1297 = vsel %vm1184, %v1166, 0
    %v1300 = vsel %vm1184, %v1167, 0
    %v1303 = vsel %vm1184, %v1168, 0
    %v1306 = vsel %vm1184, %v1169, 0
    %v1309 = vsel %vm1184, %v1170, 0
    %v1312 = vsel %vm1184, %v1171, 0
    %v1315 = vsel %vm1184, %v1172, 0
    %v1318 = vsel %vm1184, %v1173, 0
    %v1321 = vsel %vm1184, %v1174, 0
    %v1324 = vsel %vm1184, %v1175, 0
    %v1327 = vsel %vm1184, %v1176, 0
    %v1330 = vsel %vm1184, %v1177, 0
    %v1333 = vsel %vm1184, %v1178, 0
    %v1336 = vsel %vm1184, %v1179, 0
    %v1339 = vsel %vm1184, %v1180, 0
    %v1342 = vsel %vm1184, %v1181, 0
    %v1345 = vsel %vm1184, %v1182, 0
    %v1348 = vsel %vm1184, %v1183, 0
    %1350 = vmatpush.msra.mxu0 0.0
    %1351 = vmatpush.msra.mxu0 0.0
    %1352 = vmatpush.msra.mxu0 0.0
    %1353 = vmatpush.msra.mxu0 0.0
    %1354 = vmatpush.msra.mxu0 0.0
    %1355 = vmatpush.msra.mxu0 0.0
    %1356 = vmatpush.msra.mxu0 0.0
    %1357 = vmatpush.msra.mxu0 0.0
    %1358 = vmatpush.msra.mxu0 0.0
    %1359 = vmatpush.msra.mxu0 %v1253
    %1360 = vmatpush.msra.mxu0 %v1252
    %1361 = vmatpush.msra.mxu0 %v1251
    %1362 = vmatpush.msra.mxu0 %v1250
    %1363 = vmatpush.msra.mxu0 %v1249
    %1364 = vmatpush.msra.mxu0 %v1248
    %1365 = vmatpush.msra.mxu0 %v1247
    %1366 = vmatmul.f32.gmra.mxu0 %v1255
    %v1367 = vpop.f32.mrf.mxu0
    %v1368 = vadd.f32 0.0, %v1367
    %1369 = vmatmul.f32.gmra.mxu0 %v1258
    %v1370 = vpop.f32.mrf.mxu0
    %v1371 = vadd.f32 0.0, %v1370
    %1372 = vmatmul.f32.gmra.mxu0 %v1261
    %v1373 = vpop.f32.mrf.mxu0
    %v1374 = vadd.f32 0.0, %v1373
    %1375 = vmatmul.f32.gmra.mxu0 %v1264
    %v1376 = vpop.f32.mrf.mxu0
    %v1377 = vadd.f32 0.0, %v1376
    %1378 = vmatmul.f32.gmra.mxu0 %v1267
    %v1379 = vpop.f32.mrf.mxu0
    %v1380 = vadd.f32 0.0, %v1379
    %1381 = vmatmul.f32.gmra.mxu0 %v1270
    %v1382 = vpop.f32.mrf.mxu0
    %v1383 = vadd.f32 0.0, %v1382
    %1384 = vmatmul.f32.gmra.mxu0 %v1273
    %v1385 = vpop.f32.mrf.mxu0
    %v1386 = vadd.f32 0.0, %v1385
    %1387 = vmatmul.f32.gmra.mxu0 %v1276
    %v1388 = vpop.f32.mrf.mxu0
    %v1389 = vadd.f32 0.0, %v1388
    %1390 = vmatmul.f32.gmra.mxu0 %v1279
    %v1391 = vpop.f32.mrf.mxu0
    %v1392 = vadd.f32 0.0, %v1391
    %1393 = vmatmul.f32.gmra.mxu0 %v1282
    %v1394 = vpop.f32.mrf.mxu0
    %v1395 = vadd.f32 0.0, %v1394
    %1396 = vmatmul.f32.gmra.mxu0 %v1285
    %v1397 = vpop.f32.mrf.mxu0
    %v1398 = vadd.f32 0.0, %v1397
    %1399 = vmatmul.f32.gmra.mxu0 %v1288
    %v1400 = vpop.f32.mrf.mxu0
    %v1401 = vadd.f32 0.0, %v1400
    %1402 = vmatmul.f32.gmra.mxu0 %v1291
    %v1403 = vpop.f32.mrf.mxu0
    %v1404 = vadd.f32 0.0, %v1403
    %1405 = vmatmul.f32.gmra.mxu0 %v1294
    %v1406 = vpop.f32.mrf.mxu0
    %v1407 = vadd.f32 0.0, %v1406
    %1408 = vmatmul.f32.gmra.mxu0 %v1297
    %v1409 = vpop.f32.mrf.mxu0
    %v1410 = vadd.f32 0.0, %v1409
    %1411 = vmatmul.f32.gmra.mxu0 %v1300
    %v1412 = vpop.f32.mrf.mxu0
    %v1413 = vadd.f32 0.0, %v1412
    %1414 = vmatmul.f32.gmra.mxu0 %v1303
    %v1415 = vpop.f32.mrf.mxu0
    %v1416 = vadd.f32 0.0, %v1415
    %1417 = vmatmul.f32.gmra.mxu0 %v1306
    %v1418 = vpop.f32.mrf.mxu0
    %v1419 = vadd.f32 0.0, %v1418
    %1420 = vmatmul.f32.gmra.mxu0 %v1309
    %v1421 = vpop.f32.mrf.mxu0
    %v1422 = vadd.f32 0.0, %v1421
    %1423 = vmatmul.f32.gmra.mxu0 %v1312
    %v1424 = vpop.f32.mrf.mxu0
    %v1425 = vadd.f32 0.0, %v1424
    %1426 = vmatmul.f32.gmra.mxu0 %v1315
    %v1427 = vpop.f32.mrf.mxu0
    %v1428 = vadd.f32 0.0, %v1427
    %1429 = vmatmul.f32.gmra.mxu0 %v1318
    %v1430 = vpop.f32.mrf.mxu0
    %v1431 = vadd.f32 0.0, %v1430
    %1432 = vmatmul.f32.gmra.mxu0 %v1321
    %v1433 = vpop.f32.mrf.mxu0
    %v1434 = vadd.f32 0.0, %v1433
    %1435 = vmatmul.f32.gmra.mxu0 %v1324
    %v1436 = vpop.f32.mrf.mxu0
    %v1437 = vadd.f32 0.0, %v1436
    %1438 = vmatmul.f32.gmra.mxu0 %v1327
    %v1439 = vpop.f32.mrf.mxu0
    %v1440 = vadd.f32 0.0, %v1439
    %1441 = vmatmul.f32.gmra.mxu0 %v1330
    %v1442 = vpop.f32.mrf.mxu0
    %v1443 = vadd.f32 0.0, %v1442
    %1444 = vmatmul.f32.gmra.mxu0 %v1333
    %v1445 = vpop.f32.mrf.mxu0
    %v1446 = vadd.f32 0.0, %v1445
    %1447 = vmatmul.f32.gmra.mxu0 %v1336
    %v1448 = vpop.f32.mrf.mxu0
    %v1449 = vadd.f32 0.0, %v1448
    %1450 = vmatmul.f32.gmra.mxu0 %v1339
    %v1451 = vpop.f32.mrf.mxu0
    %v1452 = vadd.f32 0.0, %v1451
    %1453 = vmatmul.f32.gmra.mxu0 %v1342
    %v1454 = vpop.f32.mrf.mxu0
    %v1455 = vadd.f32 0.0, %v1454
    %1456 = vmatmul.f32.gmra.mxu0 %v1345
    %v1457 = vpop.f32.mrf.mxu0
    %v1458 = vadd.f32 0.0, %v1457
    %1459 = vmatmul.f32.gmra.mxu0 %v1348
    %v1460 = vpop.f32.mrf.mxu0
    %v1461 = vadd.f32 0.0, %v1460
    %1462 = vdwg.mxu0
    %v1463 = vld [vmem:[%s10] sm:$0xff]
    %v1464 = vld [vmem:[%s10 + $0x8] sm:$0xff]
    %v1465 = vld [vmem:[%s10 + $0x10] sm:$0xff]
    %v1466 = vld [vmem:[%s10 + $0x18] sm:$0xff]
    %v1467 = vld [vmem:[%s10 + $0x20] sm:$0xff]
    %v1468 = vld [vmem:[%s10 + $0x28] sm:$0xff]
    %v1469 = vld [vmem:[%s10 + $0x30] sm:$0xff]
    %v1471 = vsel %vm1184, %v1215, 0
    %v1474 = vsel %vm1184, %v1246, 0
    %1476 = vmatpush.msra.mxu0 0.0
    %1477 = vmatpush.msra.mxu0 0.0
    %1478 = vmatpush.msra.mxu0 0.0
    %1479 = vmatpush.msra.mxu0 0.0
    %1480 = vmatpush.msra.mxu0 0.0
    %1481 = vmatpush.msra.mxu0 0.0
    %1482 = vmatpush.msra.mxu0 0.0
    %1483 = vmatpush.msra.mxu0 0.0
    %1484 = vmatpush.msra.mxu0 0.0
    %1485 = vmatpush.msra.mxu0 %v1469
    %1486 = vmatpush.msra.mxu0 %v1468
    %1487 = vmatpush.msra.mxu0 %v1467
    %1488 = vmatpush.msra.mxu0 %v1466
    %1489 = vmatpush.msra.mxu0 %v1465
    %1490 = vmatpush.msra.mxu0 %v1464
    %1491 = vmatpush.msra.mxu0 %v1463
    %1492 = vmatmul.f32.gmra.mxu0 %v1471
    %v1493 = vpop.f32.mrf.mxu0
    %v1494 = vadd.f32 0.0, %v1493
    %1495 = vmatmul.f32.gmra.mxu0 %v1474
    %v1496 = vpop.f32.mrf.mxu0
    %v1497 = vadd.f32 0.0, %v1496
    %1498 = vdwg.mxu0
    %v1499 = vadd.f32 %v1368, %v1494
    %v1500 = vadd.f32 %v1371, %v1497
    %v1501 = vadd.f32 %v1374, %v1494
    %v1502 = vadd.f32 %v1377, %v1497
    %v1503 = vadd.f32 %v1380, %v1494
    %v1504 = vadd.f32 %v1383, %v1497
    %v1505 = vadd.f32 %v1386, %v1494
    %v1506 = vadd.f32 %v1389, %v1497
    %v1507 = vadd.f32 %v1392, %v1494
    %v1508 = vadd.f32 %v1395, %v1497
    %v1509 = vadd.f32 %v1398, %v1494
    %v1510 = vadd.f32 %v1401, %v1497
    %v1511 = vadd.f32 %v1404, %v1494
    %v1512 = vadd.f32 %v1407, %v1497
    %v1513 = vadd.f32 %v1410, %v1494
    %v1514 = vadd.f32 %v1413, %v1497
    %v1515 = vadd.f32 %v1416, %v1494
    %v1516 = vadd.f32 %v1419, %v1497
    %v1517 = vadd.f32 %v1422, %v1494
    %v1518 = vadd.f32 %v1425, %v1497
    %v1519 = vadd.f32 %v1428, %v1494
    %v1520 = vadd.f32 %v1431, %v1497
    %v1521 = vadd.f32 %v1434, %v1494
    %v1522 = vadd.f32 %v1437, %v1497
    %v1523 = vadd.f32 %v1440, %v1494
    %v1524 = vadd.f32 %v1443, %v1497
    %v1525 = vadd.f32 %v1446, %v1494
    %v1526 = vadd.f32 %v1449, %v1497
    %v1527 = vadd.f32 %v1452, %v1494
    %v1528 = vadd.f32 %v1455, %v1497
    %v1529 = vadd.f32 %v1458, %v1494
    %v1530 = vadd.f32 %v1461, %v1497
    %v1531 = vld [vmem:[%s11] sm:$0x1]
    %v1533 = vperm.slane %v1531, 0
    %v1535 = vadd.f32 %v1499, %v1533
    %v1536 = vadd.f32 %v1500, %v1533
    %v1537 = vadd.f32 %v1501, %v1533
    %v1538 = vadd.f32 %v1502, %v1533
    %v1539 = vadd.f32 %v1503, %v1533
    %v1540 = vadd.f32 %v1504, %v1533
    %v1541 = vadd.f32 %v1505, %v1533
    %v1542 = vadd.f32 %v1506, %v1533
    %v1543 = vadd.f32 %v1507, %v1533
    %v1544 = vadd.f32 %v1508, %v1533
    %v1545 = vadd.f32 %v1509, %v1533
    %v1546 = vadd.f32 %v1510, %v1533
    %v1547 = vadd.f32 %v1511, %v1533
    %v1548 = vadd.f32 %v1512, %v1533
    %v1549 = vadd.f32 %v1513, %v1533
    %v1550 = vadd.f32 %v1514, %v1533
    %v1551 = vadd.f32 %v1515, %v1533
    %v1552 = vadd.f32 %v1516, %v1533
    %v1553 = vadd.f32 %v1517, %v1533
    %v1554 = vadd.f32 %v1518, %v1533
    %v1555 = vadd.f32 %v1519, %v1533
    %v1556 = vadd.f32 %v1520, %v1533
    %v1557 = vadd.f32 %v1521, %v1533
    %v1558 = vadd.f32 %v1522, %v1533
    %v1559 = vadd.f32 %v1523, %v1533
    %v1560 = vadd.f32 %v1524, %v1533
    %v1561 = vadd.f32 %v1525, %v1533
    %v1562 = vadd.f32 %v1526, %v1533
    %v1563 = vadd.f32 %v1527, %v1533
    %v1564 = vadd.f32 %v1528, %v1533
    %v1565 = vadd.f32 %v1529, %v1533
    %v1566 = vadd.f32 %v1530, %v1533
    %v1567 = vmax.f32 %v1535, 0.0
    %v1568 = vmax.f32 %v1536, 0.0
    %v1569 = vmax.f32 %v1537, 0.0
    %v1570 = vmax.f32 %v1538, 0.0
    %v1571 = vmax.f32 %v1539, 0.0
    %v1572 = vmax.f32 %v1540, 0.0
    %v1573 = vmax.f32 %v1541, 0.0
    %v1574 = vmax.f32 %v1542, 0.0
    %v1575 = vmax.f32 %v1543, 0.0
    %v1576 = vmax.f32 %v1544, 0.0
    %v1577 = vmax.f32 %v1545, 0.0
    %v1578 = vmax.f32 %v1546, 0.0
    %v1579 = vmax.f32 %v1547, 0.0
    %v1580 = vmax.f32 %v1548, 0.0
    %v1581 = vmax.f32 %v1549, 0.0
    %v1582 = vmax.f32 %v1550, 0.0
    %v1583 = vmax.f32 %v1551, 0.0
    %v1584 = vmax.f32 %v1552, 0.0
    %v1585 = vmax.f32 %v1553, 0.0
    %v1586 = vmax.f32 %v1554, 0.0
    %v1587 = vmax.f32 %v1555, 0.0
    %v1588 = vmax.f32 %v1556, 0.0
    %v1589 = vmax.f32 %v1557, 0.0
    %v1590 = vmax.f32 %v1558, 0.0
    %v1591 = vmax.f32 %v1559, 0.0
    %v1592 = vmax.f32 %v1560, 0.0
    %v1593 = vmax.f32 %v1561, 0.0
    %v1594 = vmax.f32 %v1562, 0.0
    %v1595 = vmax.f32 %v1563, 0.0
    %v1596 = vmax.f32 %v1564, 0.0
    %v1597 = vmax.f32 %v1565, 0.0
    %v1598 = vmax.f32 %v1566, 0.0
    %v1599 = vmax.f32 %v1567, %v1571
    %v1600 = vmax.f32 %v1569, %v1573
    %v1601 = vmax.f32 %v1599, %v1575
    %v1602 = vmax.f32 %v1600, %v1577
    %v1603 = vmax.f32 %v1601, %v1579
    %v1604 = vmax.f32 %v1602, %v1581
    %v1605 = vmax.f32 %v1603, %v1583
    %v1606 = vmax.f32 %v1604, %v1585
    %v1607 = vmax.f32 %v1605, %v1587
    %v1608 = vmax.f32 %v1606, %v1589
    %v1609 = vmax.f32 %v1607, %v1591
    %v1610 = vmax.f32 %v1608, %v1593
    %v1611 = vmax.f32 %v1609, %v1595
    %v1612 = vmax.f32 %v1610, %v1597
    %v1613 = vmax.f32 %v1611, %v1612
    %v1614 = vmax.f32 %v1568, %v1572
    %v1615 = vmax.f32 %v1570, %v1574
    %v1616 = vmax.f32 %v1614, %v1576
    %v1617 = vmax.f32 %v1615, %v1578
    %v1618 = vmax.f32 %v1616, %v1580
    %v1619 = vmax.f32 %v1617, %v1582
    %v1620 = vmax.f32 %v1618, %v1584
    %v1621 = vmax.f32 %v1619, %v1586
    %v1622 = vmax.f32 %v1620, %v1588
    %v1623 = vmax.f32 %v1621, %v1590
    %v1624 = vmax.f32 %v1622, %v1592
    %v1625 = vmax.f32 %v1623, %v1594
    %v1626 = vmax.f32 %v1624, %v1596
    %v1627 = vmax.f32 %v1625, %v1598
    %v1628 = vmax.f32 %v1626, %v1627
    %1629 = vst [vmem:[#allocation2] sm:$0xff] %v1613
    %1630 = vst [vmem:[#allocation2 + $0x10] sm:$0xff] %v1628
    %1631 = vst [vmem:[#allocation2 + $0x8] sm:$0xff] %v1613
    %1632 = vst [vmem:[#allocation2 + $0x18] sm:$0xff] %v1628
    // Predicated region
    $region50: #{tpu_custom_call.1} parent=1 // pred_check
      _
    $region51: #{tpu_custom_call.1} parent=1 // pred_check_branch
      %1634 = sbr.rel (0) target = $region53
    $region52: #{tpu_custom_call.1} parent=1 // pred_region
      %1636 = vsyncadd [#allocation3], 0
      %s1637 = sshll.u32 [#allocation2], 4
      %s1638 = int_to_ptr.vmem [resolvable:$true] %s1637
      %s1639 = sshll.u32 %s12, 4
      %s1640 = int_to_ptr.hbm [resolvable:$true] %s1639
      %1645 = dma.vmem_to_hbm [thread:$0]  %s1638, 512, %s1640, [#allocation3], 256, 256, 16
    $region53: #{tpu_custom_call.1} parent=1 // pred_fallthru
      _
    // Predicated region
    $region54: #{tpu_custom_call.1} parent=1 // pred_check
      _
    $region55: #{tpu_custom_call.1} parent=1 // pred_check_branch
      %1647 = sbr.rel (0) target = $region57
    $region56: #{tpu_custom_call.1} parent=1 // pred_region
      %1649 = dma.done [#allocation3], 512
    $region57: #{tpu_custom_call.1} parent=1 // pred_fallthru
      _
    %1650 = vsyncpa [#allocation3], 1

</llo_original>
